<compile_context>
chip_gen: v6e
topology: v6e:2x2x1
jax: 0.10.0
libtpu: 0.0.40
codegen_flags: <defaults>
</compile_context>

<pallas_src>
import jax
import jax.numpy as jnp
from jax.experimental import pallas as pl
from jax.experimental.pallas import tpu as pltpu

LANE = 128
SUBLANE = 8


def _round_up(x, m):
    return ((x + m - 1) // m) * m


def _sigmoid(x):
    # sigmoid(x) == 0.5 * tanh(0.5 * x) + 0.5  (tanh runs on the EUP slot).
    return 0.5 * jnp.tanh(0.5 * x) + 0.5


def lstm_kernel(emb_ref,    # (1, TB, Ep)      bf16, one timestep of embeddings
                w0_ref,     # (Ep+Hp, 4*Hp)    bf16, fused [Wih0; Whh0], gates i,f,g,o
                b0_ref,     # (1, 4*Hp)        f32,  b_ih0 + b_hh0
                w1_ref,     # (2*Hp, 4*Hp)     bf16, fused [Wih1; Whh1]
                b1_ref,     # (1, 4*Hp)        f32,  b_ih1 + b_hh1
                fcw_ref,    # (Hp, Op)         bf16
                fcb_ref,    # (1, Op)          f32
                out_ref,    # (TB, Op)         f32, sigmoid(fc(h1_T)); column 0 is real
                hn_ref,     # (2, TB, Hp)      f32, final hidden per layer
                cn_ref,     # (2, TB, Hp)      f32, final cell per layer
                h0_ref, c0_ref, h1_ref, c1_ref,   # (TB, Hp) f32 scratch (state carry)
                x0_ref,     # (TB, Ep+Hp)      bf16 scratch: fused [x_t, h0]
                x1_ref):    # (TB, 2*Hp)       bf16 scratch: fused [h0, h1]
    t = pl.program_id(1)
    t_last = pl.num_programs(1) - 1
    TB, Hp = h0_ref.shape
    Ep = emb_ref.shape[2]

    @pl.when(t == 0)
    def _init():
        h0_ref[...] = jnp.zeros_like(h0_ref)
        c0_ref[...] = jnp.zeros_like(c0_ref)
        h1_ref[...] = jnp.zeros_like(h1_ref)
        c1_ref[...] = jnp.zeros_like(c1_ref)

    def gates_to_hc(gates, c):
        # PyTorch gate order: input, forget, cell(g), output.  Hp is a multiple
        # of 128, so every slice below is lane-aligned.
        i = _sigmoid(gates[:, 0 * Hp:1 * Hp])
        f = _sigmoid(gates[:, 1 * Hp:2 * Hp])
        g = jnp.tanh(gates[:, 2 * Hp:3 * Hp])
        o = _sigmoid(gates[:, 3 * Hp:4 * Hp])
        c_new = f * c + i * g
        h_new = o * jnp.tanh(c_new)
        return h_new, c_new

    # ---- layer 0: single fused matmul [x_t, h0] @ [Wih0; Whh0] ----
    x0_ref[:, :Ep] = emb_ref[0]
    x0_ref[:, Ep:] = h0_ref[...].astype(jnp.bfloat16)
    gates0 = (jnp.dot(x0_ref[...], w0_ref[...],
                      preferred_element_type=jnp.float32) + b0_ref[...])
    h0_new, c0_new = gates_to_hc(gates0, c0_ref[...])

    # ---- layer 1 (inter-layer dropout == identity at inference) ----
    x1_ref[:, :Hp] = h0_new.astype(jnp.bfloat16)
    x1_ref[:, Hp:] = h1_ref[...].astype(jnp.bfloat16)
    gates1 = (jnp.dot(x1_ref[...], w1_ref[...],
                      preferred_element_type=jnp.float32) + b1_ref[...])
    h1_new, c1_new = gates_to_hc(gates1, c1_ref[...])

    h0_ref[...] = h0_new
    c0_ref[...] = c0_new
    h1_ref[...] = h1_new
    c1_ref[...] = c1_new

    # ---- last timestep: FC + sigmoid head, emit h_n / c_n ----
    @pl.when(t == t_last)
    def _finalize():
        logit = (jnp.dot(h1_new.astype(jnp.bfloat16), fcw_ref[...],
                         preferred_element_type=jnp.float32) + fcb_ref[...])
        out_ref[...] = _sigmoid(logit)   # output-side dropout is identity at inference
        hn_ref[0] = h0_new
        hn_ref[1] = h1_new
        cn_ref[0] = c0_new
        cn_ref[1] = c1_new


def _fuse_lstm_layer(wih, whh, bih, bhh, in_dim_p, Hp):
    """PyTorch (4H,in_dim)/(4H,H) weights -> bf16 (in_dim_p+Hp, 4*Hp) fused,
    lane-padded, pre-transposed weight and f32 (1, 4*Hp) fused bias."""
    fourH, in_dim = wih.shape
    H = fourH // 4
    bsum = bih + bhh
    w_blocks, b_blocks = [], []
    for k in range(4):   # gate order i, f, g, o (PyTorch)
        wk_ih = jnp.pad(wih[k * H:(k + 1) * H, :].T,
                        ((0, in_dim_p - in_dim), (0, Hp - H)))
        wk_hh = jnp.pad(whh[k * H:(k + 1) * H, :].T,
                        ((0, Hp - H), (0, Hp - H)))
        w_blocks.append(jnp.concatenate([wk_ih, wk_hh], axis=0))
        b_blocks.append(jnp.pad(bsum[k * H:(k + 1) * H], (0, Hp - H)))
    w = jnp.concatenate(w_blocks, axis=1).astype(jnp.bfloat16)
    b = jnp.concatenate(b_blocks)[None, :].astype(jnp.float32)
    return w, b


@jax.jit
def sentiment_lstm_forward(x_tokens, params):
    """x_tokens: (B, T) int32 token ids.  Returns (out[B], (h_n, c_n)) matching
    PyTorch SentimentLSTM.forward at inference."""
    B, T = x_tokens.shape
    emb_table = params["emb"]
    E = emb_table.shape[1]
    H = params["whh0"].shape[1]
    O = params["fcw"].shape[0]

    Ep = _round_up(E, LANE)
    Hp = _round_up(H, LANE)
    Op = _round_up(O, LANE)
    if B >= LANE:
        Bp = _round_up(B, LANE)
        TB = LANE
    else:
        Bp = _round_up(B, SUBLANE)
        TB = Bp
    n_bblk = Bp // TB

    # Embedding gather directly into time-major (T, B, E) layout (single HBM
    # pass, no separate transpose of the activation); pad and cast to bf16.
    # TODO(synk): the gather could be moved in-kernel via scalar-prefetch row
    # DMAs from the (V, E) table; it is done with XLA jnp.take here.
    emb_tm = jnp.take(emb_table.astype(jnp.bfloat16), x_tokens.T, axis=0)  # (T, B, E)
    emb_tm = jnp.pad(emb_tm, ((0, 0), (0, Bp - B), (0, Ep - E)))

    w0, b0 = _fuse_lstm_layer(params["wih0"], params["whh0"],
                              params["bih0"], params["bhh0"], Ep, Hp)
    w1, b1 = _fuse_lstm_layer(params["wih1"], params["whh1"],
                              params["bih1"], params["bhh1"], Hp, Hp)
    fcw = jnp.pad(params["fcw"].T, ((0, Hp - H), (0, Op - O))).astype(jnp.bfloat16)
    fcb = jnp.pad(params["fcb"], (0, Op - O))[None, :].astype(jnp.float32)

    # Explicit VMEM budget (v7x has only 64 MiB physical / 32 MiB default scoped).
    vmem_working = (
        2 * TB * Ep * 2                          # streamed emb slab (double buffered), bf16
        + (Ep + Hp) * 4 * Hp * 2                 # fused W layer 0, bf16
        + (2 * Hp) * 4 * Hp * 2                  # fused W layer 1, bf16
        + 2 * 4 * Hp * 4                         # fused biases, f32
        + Hp * Op * 2 + Op * 4                   # fc head
        + 4 * TB * Hp * 4                        # h/c scratch, f32
        + TB * (Ep + Hp) * 2 + TB * 2 * Hp * 2   # fused-input scratch, bf16
        + TB * Op * 4 + 2 * 2 * TB * Hp * 4      # out / h_n / c_n blocks, f32
    )
    vmem_limit = int(min(32 * 1024 * 1024, max(8 * vmem_working, 16 * 1024 * 1024)))

    flops = (n_bblk * T * (2 * TB * (Ep + Hp) * 4 * Hp + 2 * TB * 2 * Hp * 4 * Hp)
             + n_bblk * 2 * TB * Hp * Op)
    transcendentals = n_bblk * (T * 2 * 5 * TB * Hp + TB * Op)
    bytes_accessed = (T * Bp * Ep * 2
                      + n_bblk * ((Ep + Hp + 2 * Hp) * 4 * Hp + Hp * Op) * 2
                      + Bp * Op * 4 + 4 * Bp * Hp * 4)

    out_p, hn_p, cn_p = pl.pallas_call(
        lstm_kernel,
        out_shape=(
            jax.ShapeDtypeStruct((Bp, Op), jnp.float32),
            jax.ShapeDtypeStruct((2, Bp, Hp), jnp.float32),
            jax.ShapeDtypeStruct((2, Bp, Hp), jnp.float32),
        ),
        grid_spec=pltpu.PrefetchScalarGridSpec(
            num_scalar_prefetch=0,
            grid=(n_bblk, T),                                        # (batch blocks, time)
            in_specs=[
                pl.BlockSpec((1, TB, Ep), lambda b, t: (t, b, 0)),   # streamed x_t
                pl.BlockSpec((Ep + Hp, 4 * Hp), lambda b, t: (0, 0)),  # resident weights
                pl.BlockSpec((1, 4 * Hp), lambda b, t: (0, 0)),
                pl.BlockSpec((2 * Hp, 4 * Hp), lambda b, t: (0, 0)),
                pl.BlockSpec((1, 4 * Hp), lambda b, t: (0, 0)),
                pl.BlockSpec((Hp, Op), lambda b, t: (0, 0)),
                pl.BlockSpec((1, Op), lambda b, t: (0, 0)),
            ],
            out_specs=[
                pl.BlockSpec((TB, Op), lambda b, t: (b, 0)),
                pl.BlockSpec((2, TB, Hp), lambda b, t: (0, b, 0)),
                pl.BlockSpec((2, TB, Hp), lambda b, t: (0, b, 0)),
            ],
            scratch_shapes=[
                pltpu.VMEM((TB, Hp), jnp.float32),        # h0
                pltpu.VMEM((TB, Hp), jnp.float32),        # c0
                pltpu.VMEM((TB, Hp), jnp.float32),        # h1
                pltpu.VMEM((TB, Hp), jnp.float32),        # c1
                pltpu.VMEM((TB, Ep + Hp), jnp.bfloat16),  # fused [x_t, h0]
                pltpu.VMEM((TB, 2 * Hp), jnp.bfloat16),   # fused [h0, h1]
            ],
        ),
        compiler_params=pltpu.CompilerParams(
            dimension_semantics=("parallel", "arbitrary"),
            vmem_limit_bytes=vmem_limit,
        ),
        cost_estimate=pl.CostEstimate(
            flops=int(flops),
            transcendentals=int(transcendentals),
            bytes_accessed=int(bytes_accessed),
        ),
    )(emb_tm, w0, b0, w1, b1, fcw, fcb)

    out = out_p[:B, 0]
    h_n = hn_p[:, :B, :H]
    c_n = cn_p[:, :B, :H]
    return out, (h_n, c_n)


def _reference_forward(x_tokens, params):
    """Pure-JAX f32 reference of the PyTorch forward (inference semantics)."""
    B, T = x_tokens.shape
    H = params["whh0"].shape[1]
    emb = jnp.take(params["emb"], x_tokens, axis=0)   # (B, T, E)

    def cell(x_t, h, c, wih, whh, bih, bhh):
        gates = x_t @ wih.T + h @ whh.T + bih + bhh
        i, f, g, o = jnp.split(gates, 4, axis=1)
        i = jax.nn.sigmoid(i)
        f = jax.nn.sigmoid(f)
        g = jnp.tanh(g)
        o = jax.nn.sigmoid(o)
        c = f * c + i * g
        return o * jnp.tanh(c), c

    h0 = c0 = h1 = c1 = jnp.zeros((B, H), jnp.float32)
    for t in range(T):
        h0, c0 = cell(emb[:, t], h0, c0, params["wih0"], params["whh0"],
                      params["bih0"], params["bhh0"])
        h1, c1 = cell(h0, h1, c1, params["wih1"], params["whh1"],
                      params["bih1"], params["bhh1"])
    out = jax.nn.sigmoid(h1 @ params["fcw"].T + params["fcb"])[:, 0]
    return out, (jnp.stack([h0, h1]), jnp.stack([c0, c1]))


def init_params(key, vocab_size, embedding_dim, hidden_dim, output_size):
    ks = jax.random.split(key, 11)
    H4 = 4 * hidden_dim
    s = 0.1
    return {
        "emb":  s * jax.random.normal(ks[0], (vocab_size, embedding_dim), jnp.float32),
        "wih0": s * jax.random.normal(ks[1], (H4, embedding_dim), jnp.float32),
        "whh0": s * jax.random.normal(ks[2], (H4, hidden_dim), jnp.float32),
        "bih0": s * jax.random.normal(ks[3], (H4,), jnp.float32),
        "bhh0": s * jax.random.normal(ks[4], (H4,), jnp.float32),
        "wih1": s * jax.random.normal(ks[5], (H4, hidden_dim), jnp.float32),
        "whh1": s * jax.random.normal(ks[6], (H4, hidden_dim), jnp.float32),
        "bih1": s * jax.random.normal(ks[7], (H4,), jnp.float32),
        "bhh1": s * jax.random.normal(ks[8], (H4,), jnp.float32),
        "fcw":  s * jax.random.normal(ks[9], (output_size, hidden_dim), jnp.float32),
        "fcb":  s * jax.random.normal(ks[10], (output_size,), jnp.float32),
    }


if __name__ == "__main__":
    # Small shapes consistent with the module (vocab_size, output_size=1,
    # embedding_dim, hidden_dim, n_layers=2), scaled down for a smoke test.
    vocab_size = 50
    embedding_dim = 32
    hidden_dim = 32
    output_size = 1
    batch = 2
    seq_len = 8

    key = jax.random.PRNGKey(0)
    pkey, xkey = jax.random.split(key)
    params = init_params(pkey, vocab_size, embedding_dim, hidden_dim, output_size)
    x = jax.random.randint(xkey, (batch, seq_len), 1, vocab_size, dtype=jnp.int32)

    out, (h_n, c_n) = sentiment_lstm_forward(x, params)
    jax.block_until_ready(out)
    jax.block_until_ready(h_n)
    jax.block_until_ready(c_n)

    assert out.shape == (batch,)
    assert h_n.shape == (2, batch, hidden_dim)
    assert c_n.shape == (2, batch, hidden_dim)

    # Correctness vs. pure-JAX f32 reference (bf16 matmul inputs -> loose tol).
    out_ref, (h_ref, c_ref) = _reference_forward(x, params)
    assert float(jnp.max(jnp.abs(out - out_ref))) < 3e-2
    assert float(jnp.max(jnp.abs(h_n - h_ref))) < 3e-2
    assert float(jnp.max(jnp.abs(c_n - c_ref))) < 3e-2

    # TODO(synk): nn.Dropout / LSTM inter-layer dropout are identity here
    # (inference semantics); no stochastic masking implemented.
    print("KERNEL_OK")
</pallas_src>

<mosaic_0001>
module attributes {stable_mosaic.version = 11 : i64} {
  func.func @lstm_kernel(%arg0: i32, %arg1: i32, %arg2: memref<1x8x128xbf16, #tpu.memory_space<vmem>>, %arg3: memref<256x512xbf16, #tpu.memory_space<vmem>>, %arg4: memref<1x512xf32, #tpu.memory_space<vmem>>, %arg5: memref<256x512xbf16, #tpu.memory_space<vmem>>, %arg6: memref<1x512xf32, #tpu.memory_space<vmem>>, %arg7: memref<128x128xbf16, #tpu.memory_space<vmem>>, %arg8: memref<1x128xf32, #tpu.memory_space<vmem>>, %arg9: memref<8x128xf32, #tpu.memory_space<vmem>>, %arg10: memref<2x8x128xf32, #tpu.memory_space<vmem>>, %arg11: memref<2x8x128xf32, #tpu.memory_space<vmem>>, %arg12: memref<8x128xf32, #tpu.memory_space<vmem>>, %arg13: memref<8x128xf32, #tpu.memory_space<vmem>>, %arg14: memref<8x128xf32, #tpu.memory_space<vmem>>, %arg15: memref<8x128xf32, #tpu.memory_space<vmem>>, %arg16: memref<8x256xbf16, #tpu.memory_space<vmem>>, %arg17: memref<8x256xbf16, #tpu.memory_space<vmem>>) attributes {dimension_semantics = [#tpu.dimension_semantics<parallel>, #tpu.dimension_semantics<arbitrary>], iteration_bounds = array<i64: 1, 8>, scalar_prefetch = 0 : i64, scratch_operands = 6 : i64, tpu.core_type = #tpu.core_type<tc>, window_params = [{transform_indices = @transform_0, window_bounds = array<i64: 1, 8, 128>}, {pipeline_mode = #tpu.pipeline_mode<synchronous>, transform_indices = @transform_1, window_bounds = array<i64: 256, 512>}, {pipeline_mode = #tpu.pipeline_mode<synchronous>, transform_indices = @transform_2, window_bounds = array<i64: 1, 512>}, {pipeline_mode = #tpu.pipeline_mode<synchronous>, transform_indices = @transform_3, window_bounds = array<i64: 256, 512>}, {pipeline_mode = #tpu.pipeline_mode<synchronous>, transform_indices = @transform_4, window_bounds = array<i64: 1, 512>}, {pipeline_mode = #tpu.pipeline_mode<synchronous>, transform_indices = @transform_5, window_bounds = array<i64: 128, 128>}, {pipeline_mode = #tpu.pipeline_mode<synchronous>, transform_indices = @transform_6, window_bounds = array<i64: 1, 128>}, {transform_indices = @transform_7, window_bounds = array<i64: 8, 128>}, {transform_indices = @transform_8, window_bounds = array<i64: 2, 8, 128>}, {transform_indices = @transform_9, window_bounds = array<i64: 2, 8, 128>}]} {
    %c0_i32 = arith.constant 0 : i32
    %0 = arith.cmpi eq, %arg1, %c0_i32 : i32
    %1 = arith.extui %0 : i1 to i32
    %c0_i32_0 = arith.constant 0 : i32
    %2 = arith.cmpi ne, %1, %c0_i32_0 : i32
    scf.if %2 {
      %cst_58 = arith.constant 0.000000e+00 : f32
      %97 = vector.broadcast %cst_58 : f32 to vector<8x128xf32>
      %c0_59 = arith.constant 0 : index
      %c0_60 = arith.constant 0 : index
      %98 = vector.load %arg12[%c0_59, %c0_60] : memref<8x128xf32, #tpu.memory_space<vmem>>, vector<8x128xf32>
      tpu.vector_store %arg12[%c0_59, %c0_60], %97 {strides = array<i32>} : memref<8x128xf32, #tpu.memory_space<vmem>>, vector<8x128xf32>,
      %cst_61 = arith.constant 0.000000e+00 : f32
      %99 = vector.broadcast %cst_61 : f32 to vector<8x128xf32>
      %c0_62 = arith.constant 0 : index
      %c0_63 = arith.constant 0 : index
      %100 = vector.load %arg13[%c0_62, %c0_63] : memref<8x128xf32, #tpu.memory_space<vmem>>, vector<8x128xf32>
      tpu.vector_store %arg13[%c0_62, %c0_63], %99 {strides = array<i32>} : memref<8x128xf32, #tpu.memory_space<vmem>>, vector<8x128xf32>,
      %cst_64 = arith.constant 0.000000e+00 : f32
      %101 = vector.broadcast %cst_64 : f32 to vector<8x128xf32>
      %c0_65 = arith.constant 0 : index
      %c0_66 = arith.constant 0 : index
      %102 = vector.load %arg14[%c0_65, %c0_66] : memref<8x128xf32, #tpu.memory_space<vmem>>, vector<8x128xf32>
      tpu.vector_store %arg14[%c0_65, %c0_66], %101 {strides = array<i32>} : memref<8x128xf32, #tpu.memory_space<vmem>>, vector<8x128xf32>,
      %cst_67 = arith.constant 0.000000e+00 : f32
      %103 = vector.broadcast %cst_67 : f32 to vector<8x128xf32>
      %c0_68 = arith.constant 0 : index
      %c0_69 = arith.constant 0 : index
      %104 = vector.load %arg15[%c0_68, %c0_69] : memref<8x128xf32, #tpu.memory_space<vmem>>, vector<8x128xf32>
      tpu.vector_store %arg15[%c0_68, %c0_69], %103 {strides = array<i32>} : memref<8x128xf32, #tpu.memory_space<vmem>>, vector<8x128xf32>,
    } else {
    }
    %c0 = arith.constant 0 : index
    %c0_1 = arith.constant 0 : index
    %c0_2 = arith.constant 0 : index
    %3 = vector.load %arg2[%c0, %c0_1, %c0_2] : memref<1x8x128xbf16, #tpu.memory_space<vmem>>, vector<1x8x128xbf16>
    %4 = vector.shape_cast %3 : vector<1x8x128xbf16> to vector<8x128xbf16>
    %c0_3 = arith.constant 0 : index
    %c0_4 = arith.constant 0 : index
    %5 = vector.load %arg16[%c0_3, %c0_4] : memref<8x256xbf16, #tpu.memory_space<vmem>>, vector<8x128xbf16>
    tpu.vector_store %arg16[%c0_3, %c0_4], %4 {strides = array<i32>} : memref<8x256xbf16, #tpu.memory_space<vmem>>, vector<8x128xbf16>,
    %c0_5 = arith.constant 0 : index
    %c0_6 = arith.constant 0 : index
    %6 = vector.load %arg12[%c0_5, %c0_6] : memref<8x128xf32, #tpu.memory_space<vmem>>, vector<8x128xf32>
    %7 = arith.truncf %6 : vector<8x128xf32> to vector<8x128xbf16>
    %c0_7 = arith.constant 0 : index
    %c128 = arith.constant 128 : index
    %8 = vector.load %arg16[%c0_7, %c128] : memref<8x256xbf16, #tpu.memory_space<vmem>>, vector<8x128xbf16>
    tpu.vector_store %arg16[%c0_7, %c128], %7 {strides = array<i32>} : memref<8x256xbf16, #tpu.memory_space<vmem>>, vector<8x128xbf16>,
    %c0_8 = arith.constant 0 : index
    %c0_9 = arith.constant 0 : index
    %9 = vector.load %arg16[%c0_8, %c0_9] : memref<8x256xbf16, #tpu.memory_space<vmem>>, vector<8x256xbf16>
    %c0_10 = arith.constant 0 : index
    %c0_11 = arith.constant 0 : index
    %10 = vector.load %arg3[%c0_10, %c0_11] : memref<256x512xbf16, #tpu.memory_space<vmem>>, vector<256x512xbf16>
    %cst = arith.constant dense<0.000000e+00> : vector<8x512xf32>
    %11 = tpu.matmul %9, %10, %cst {dimension_numbers = #tpu.dot_dimension_numbers<[1], [0], [0], [1], [0, 0, 1, 1], [], []>} : vector<8x256xbf16>, vector<256x512xbf16>, vector<8x512xf32> -> vector<8x512xf32>
    %c0_12 = arith.constant 0 : index
    %c0_13 = arith.constant 0 : index
    %12 = vector.load %arg4[%c0_12, %c0_13] : memref<1x512xf32, #tpu.memory_space<vmem>>, vector<1x512xf32>
    %13 = vector.broadcast %12 : vector<1x512xf32> to vector<8x512xf32>
    %14 = arith.addf %11, %13 : vector<8x512xf32>
    %c0_14 = arith.constant 0 : index
    %c0_15 = arith.constant 0 : index
    %15 = vector.load %arg13[%c0_14, %c0_15] : memref<8x128xf32, #tpu.memory_space<vmem>>, vector<8x128xf32>
    %16 = vector.extract_strided_slice %14 {offsets = [0, 0], sizes = [8, 128], strides = [1, 1]} : vector<8x512xf32> to vector<8x128xf32>
    %cst_16 = arith.constant 5.000000e-01 : f32
    %17 = vector.broadcast %cst_16 : f32 to vector<8x128xf32>
    %18 = arith.mulf %17, %16 : vector<8x128xf32>
    %19 = math.tanh %18 : vector<8x128xf32>
    %cst_17 = arith.constant 5.000000e-01 : f32
    %20 = vector.broadcast %cst_17 : f32 to vector<8x128xf32>
    %21 = arith.mulf %20, %19 : vector<8x128xf32>
    %cst_18 = arith.constant 5.000000e-01 : f32
    %22 = vector.broadcast %cst_18 : f32 to vector<8x128xf32>
    %23 = arith.addf %21, %22 : vector<8x128xf32>
    %24 = vector.extract_strided_slice %14 {offsets = [0, 128], sizes = [8, 128], strides = [1, 1]} : vector<8x512xf32> to vector<8x128xf32>
    %cst_19 = arith.constant 5.000000e-01 : f32
    %25 = vector.broadcast %cst_19 : f32 to vector<8x128xf32>
    %26 = arith.mulf %25, %24 : vector<8x128xf32>
    %27 = math.tanh %26 : vector<8x128xf32>
    %cst_20 = arith.constant 5.000000e-01 : f32
    %28 = vector.broadcast %cst_20 : f32 to vector<8x128xf32>
    %29 = arith.mulf %28, %27 : vector<8x128xf32>
    %cst_21 = arith.constant 5.000000e-01 : f32
    %30 = vector.broadcast %cst_21 : f32 to vector<8x128xf32>
    %31 = arith.addf %29, %30 : vector<8x128xf32>
    %32 = vector.extract_strided_slice %14 {offsets = [0, 256], sizes = [8, 128], strides = [1, 1]} : vector<8x512xf32> to vector<8x128xf32>
    %33 = math.tanh %32 : vector<8x128xf32>
    %34 = vector.extract_strided_slice %14 {offsets = [0, 384], sizes = [8, 128], strides = [1, 1]} : vector<8x512xf32> to vector<8x128xf32>
    %cst_22 = arith.constant 5.000000e-01 : f32
    %35 = vector.broadcast %cst_22 : f32 to vector<8x128xf32>
    %36 = arith.mulf %35, %34 : vector<8x128xf32>
    %37 = math.tanh %36 : vector<8x128xf32>
    %cst_23 = arith.constant 5.000000e-01 : f32
    %38 = vector.broadcast %cst_23 : f32 to vector<8x128xf32>
    %39 = arith.mulf %38, %37 : vector<8x128xf32>
    %cst_24 = arith.constant 5.000000e-01 : f32
    %40 = vector.broadcast %cst_24 : f32 to vector<8x128xf32>
    %41 = arith.addf %39, %40 : vector<8x128xf32>
    %42 = arith.mulf %31, %15 : vector<8x128xf32>
    %43 = arith.mulf %23, %33 : vector<8x128xf32>
    %44 = arith.addf %42, %43 : vector<8x128xf32>
    %45 = math.tanh %44 : vector<8x128xf32>
    %46 = arith.mulf %41, %45 : vector<8x128xf32>
    %47 = arith.truncf %46 : vector<8x128xf32> to vector<8x128xbf16>
    %c0_25 = arith.constant 0 : index
    %c0_26 = arith.constant 0 : index
    %48 = vector.load %arg17[%c0_25, %c0_26] : memref<8x256xbf16, #tpu.memory_space<vmem>>, vector<8x128xbf16>
    tpu.vector_store %arg17[%c0_25, %c0_26], %47 {strides = array<i32>} : memref<8x256xbf16, #tpu.memory_space<vmem>>, vector<8x128xbf16>,
    %c0_27 = arith.constant 0 : index
    %c0_28 = arith.constant 0 : index
    %49 = vector.load %arg14[%c0_27, %c0_28] : memref<8x128xf32, #tpu.memory_space<vmem>>, vector<8x128xf32>
    %50 = arith.truncf %49 : vector<8x128xf32> to vector<8x128xbf16>
    %c0_29 = arith.constant 0 : index
    %c128_30 = arith.constant 128 : index
    %51 = vector.load %arg17[%c0_29, %c128_30] : memref<8x256xbf16, #tpu.memory_space<vmem>>, vector<8x128xbf16>
    tpu.vector_store %arg17[%c0_29, %c128_30], %50 {strides = array<i32>} : memref<8x256xbf16, #tpu.memory_space<vmem>>, vector<8x128xbf16>,
    %c0_31 = arith.constant 0 : index
    %c0_32 = arith.constant 0 : index
    %52 = vector.load %arg17[%c0_31, %c0_32] : memref<8x256xbf16, #tpu.memory_space<vmem>>, vector<8x256xbf16>
    %c0_33 = arith.constant 0 : index
    %c0_34 = arith.constant 0 : index
    %53 = vector.load %arg5[%c0_33, %c0_34] : memref<256x512xbf16, #tpu.memory_space<vmem>>, vector<256x512xbf16>
    %cst_35 = arith.constant dense<0.000000e+00> : vector<8x512xf32>
    %54 = tpu.matmul %52, %53, %cst_35 {dimension_numbers = #tpu.dot_dimension_numbers<[1], [0], [0], [1], [0, 0, 1, 1], [], []>} : vector<8x256xbf16>, vector<256x512xbf16>, vector<8x512xf32> -> vector<8x512xf32>
    %c0_36 = arith.constant 0 : index
    %c0_37 = arith.constant 0 : index
    %55 = vector.load %arg6[%c0_36, %c0_37] : memref<1x512xf32, #tpu.memory_space<vmem>>, vector<1x512xf32>
    %56 = vector.broadcast %55 : vector<1x512xf32> to vector<8x512xf32>
    %57 = arith.addf %54, %56 : vector<8x512xf32>
    %c0_38 = arith.constant 0 : index
    %c0_39 = arith.constant 0 : index
    %58 = vector.load %arg15[%c0_38, %c0_39] : memref<8x128xf32, #tpu.memory_space<vmem>>, vector<8x128xf32>
    %59 = vector.extract_strided_slice %57 {offsets = [0, 0], sizes = [8, 128], strides = [1, 1]} : vector<8x512xf32> to vector<8x128xf32>
    %cst_40 = arith.constant 5.000000e-01 : f32
    %60 = vector.broadcast %cst_40 : f32 to vector<8x128xf32>
    %61 = arith.mulf %60, %59 : vector<8x128xf32>
    %62 = math.tanh %61 : vector<8x128xf32>
    %cst_41 = arith.constant 5.000000e-01 : f32
    %63 = vector.broadcast %cst_41 : f32 to vector<8x128xf32>
    %64 = arith.mulf %63, %62 : vector<8x128xf32>
    %cst_42 = arith.constant 5.000000e-01 : f32
    %65 = vector.broadcast %cst_42 : f32 to vector<8x128xf32>
    %66 = arith.addf %64, %65 : vector<8x128xf32>
    %67 = vector.extract_strided_slice %57 {offsets = [0, 128], sizes = [8, 128], strides = [1, 1]} : vector<8x512xf32> to vector<8x128xf32>
    %cst_43 = arith.constant 5.000000e-01 : f32
    %68 = vector.broadcast %cst_43 : f32 to vector<8x128xf32>
    %69 = arith.mulf %68, %67 : vector<8x128xf32>
    %70 = math.tanh %69 : vector<8x128xf32>
    %cst_44 = arith.constant 5.000000e-01 : f32
    %71 = vector.broadcast %cst_44 : f32 to vector<8x128xf32>
    %72 = arith.mulf %71, %70 : vector<8x128xf32>
    %cst_45 = arith.constant 5.000000e-01 : f32
    %73 = vector.broadcast %cst_45 : f32 to vector<8x128xf32>
    %74 = arith.addf %72, %73 : vector<8x128xf32>
    %75 = vector.extract_strided_slice %57 {offsets = [0, 256], sizes = [8, 128], strides = [1, 1]} : vector<8x512xf32> to vector<8x128xf32>
    %76 = math.tanh %75 : vector<8x128xf32>
    %77 = vector.extract_strided_slice %57 {offsets = [0, 384], sizes = [8, 128], strides = [1, 1]} : vector<8x512xf32> to vector<8x128xf32>
    %cst_46 = arith.constant 5.000000e-01 : f32
    %78 = vector.broadcast %cst_46 : f32 to vector<8x128xf32>
    %79 = arith.mulf %78, %77 : vector<8x128xf32>
    %80 = math.tanh %79 : vector<8x128xf32>
    %cst_47 = arith.constant 5.000000e-01 : f32
    %81 = vector.broadcast %cst_47 : f32 to vector<8x128xf32>
    %82 = arith.mulf %81, %80 : vector<8x128xf32>
    %cst_48 = arith.constant 5.000000e-01 : f32
    %83 = vector.broadcast %cst_48 : f32 to vector<8x128xf32>
    %84 = arith.addf %82, %83 : vector<8x128xf32>
    %85 = arith.mulf %74, %58 : vector<8x128xf32>
    %86 = arith.mulf %66, %76 : vector<8x128xf32>
    %87 = arith.addf %85, %86 : vector<8x128xf32>
    %88 = math.tanh %87 : vector<8x128xf32>
    %89 = arith.mulf %84, %88 : vector<8x128xf32>
    %c0_49 = arith.constant 0 : index
    %c0_50 = arith.constant 0 : index
    %90 = vector.load %arg12[%c0_49, %c0_50] : memref<8x128xf32, #tpu.memory_space<vmem>>, vector<8x128xf32>
    tpu.vector_store %arg12[%c0_49, %c0_50], %46 {strides = array<i32>} : memref<8x128xf32, #tpu.memory_space<vmem>>, vector<8x128xf32>,
    %c0_51 = arith.constant 0 : index
    %c0_52 = arith.constant 0 : index
    %91 = vector.load %arg13[%c0_51, %c0_52] : memref<8x128xf32, #tpu.memory_space<vmem>>, vector<8x128xf32>
    tpu.vector_store %arg13[%c0_51, %c0_52], %44 {strides = array<i32>} : memref<8x128xf32, #tpu.memory_space<vmem>>, vector<8x128xf32>,
    %c0_53 = arith.constant 0 : index
    %c0_54 = arith.constant 0 : index
    %92 = vector.load %arg14[%c0_53, %c0_54] : memref<8x128xf32, #tpu.memory_space<vmem>>, vector<8x128xf32>
    tpu.vector_store %arg14[%c0_53, %c0_54], %89 {strides = array<i32>} : memref<8x128xf32, #tpu.memory_space<vmem>>, vector<8x128xf32>,
    %c0_55 = arith.constant 0 : index
    %c0_56 = arith.constant 0 : index
    %93 = vector.load %arg15[%c0_55, %c0_56] : memref<8x128xf32, #tpu.memory_space<vmem>>, vector<8x128xf32>
    tpu.vector_store %arg15[%c0_55, %c0_56], %87 {strides = array<i32>} : memref<8x128xf32, #tpu.memory_space<vmem>>, vector<8x128xf32>,
    %c7_i32 = arith.constant 7 : i32
    %94 = arith.cmpi eq, %arg1, %c7_i32 : i32
    %95 = arith.extui %94 : i1 to i32
    %c0_i32_57 = arith.constant 0 : i32
    %96 = arith.cmpi ne, %95, %c0_i32_57 : i32
    scf.if %96 {
      %97 = arith.truncf %89 : vector<8x128xf32> to vector<8x128xbf16>
      %c0_58 = arith.constant 0 : index
      %c0_59 = arith.constant 0 : index
      %98 = vector.load %arg7[%c0_58, %c0_59] : memref<128x128xbf16, #tpu.memory_space<vmem>>, vector<128x128xbf16>
      %cst_60 = arith.constant dense<0.000000e+00> : vector<8x128xf32>
      %99 = tpu.matmul %97, %98, %cst_60 {dimension_numbers = #tpu.dot_dimension_numbers<[1], [0], [0], [1], [0, 0, 1, 1], [], []>} : vector<8x128xbf16>, vector<128x128xbf16>, vector<8x128xf32> -> vector<8x128xf32>
      %c0_61 = arith.constant 0 : index
      %c0_62 = arith.constant 0 : index
      %100 = vector.load %arg8[%c0_61, %c0_62] : memref<1x128xf32, #tpu.memory_space<vmem>>, vector<1x128xf32>
      %101 = vector.broadcast %100 : vector<1x128xf32> to vector<8x128xf32>
      %102 = arith.addf %99, %101 : vector<8x128xf32>
      %cst_63 = arith.constant 5.000000e-01 : f32
      %103 = vector.broadcast %cst_63 : f32 to vector<8x128xf32>
      %104 = arith.mulf %103, %102 : vector<8x128xf32>
      %105 = math.tanh %104 : vector<8x128xf32>
      %cst_64 = arith.constant 5.000000e-01 : f32
      %106 = vector.broadcast %cst_64 : f32 to vector<8x128xf32>
      %107 = arith.mulf %106, %105 : vector<8x128xf32>
      %cst_65 = arith.constant 5.000000e-01 : f32
      %108 = vector.broadcast %cst_65 : f32 to vector<8x128xf32>
      %109 = arith.addf %107, %108 : vector<8x128xf32>
      %c0_66 = arith.constant 0 : index
      %c0_67 = arith.constant 0 : index
      %110 = vector.load %arg9[%c0_66, %c0_67] : memref<8x128xf32, #tpu.memory_space<vmem>>, vector<8x128xf32>
      tpu.vector_store %arg9[%c0_66, %c0_67], %109 {strides = array<i32>} : memref<8x128xf32, #tpu.memory_space<vmem>>, vector<8x128xf32>,
      %c0_68 = arith.constant 0 : index
      %c0_69 = arith.constant 0 : index
      %c0_70 = arith.constant 0 : index
      %111 = vector.load %arg10[%c0_68, %c0_69, %c0_70] : memref<2x8x128xf32, #tpu.memory_space<vmem>>, vector<1x8x128xf32>
      %112 = vector.shape_cast %111 : vector<1x8x128xf32> to vector<8x128xf32>
      %113 = vector.shape_cast %46 : vector<8x128xf32> to vector<1x8x128xf32>
      tpu.vector_store %arg10[%c0_68, %c0_69, %c0_70], %113 {strides = array<i32>} : memref<2x8x128xf32, #tpu.memory_space<vmem>>, vector<1x8x128xf32>,
      %c1 = arith.constant 1 : index
      %c0_71 = arith.constant 0 : index
      %c0_72 = arith.constant 0 : index
      %114 = vector.load %arg10[%c1, %c0_71, %c0_72] : memref<2x8x128xf32, #tpu.memory_space<vmem>>, vector<1x8x128xf32>
      %115 = vector.shape_cast %114 : vector<1x8x128xf32> to vector<8x128xf32>
      %116 = vector.shape_cast %89 : vector<8x128xf32> to vector<1x8x128xf32>
      tpu.vector_store %arg10[%c1, %c0_71, %c0_72], %116 {strides = array<i32>} : memref<2x8x128xf32, #tpu.memory_space<vmem>>, vector<1x8x128xf32>,
      %c0_73 = arith.constant 0 : index
      %c0_74 = arith.constant 0 : index
      %c0_75 = arith.constant 0 : index
      %117 = vector.load %arg11[%c0_73, %c0_74, %c0_75] : memref<2x8x128xf32, #tpu.memory_space<vmem>>, vector<1x8x128xf32>
      %118 = vector.shape_cast %117 : vector<1x8x128xf32> to vector<8x128xf32>
      %119 = vector.shape_cast %44 : vector<8x128xf32> to vector<1x8x128xf32>
      tpu.vector_store %arg11[%c0_73, %c0_74, %c0_75], %119 {strides = array<i32>} : memref<2x8x128xf32, #tpu.memory_space<vmem>>, vector<1x8x128xf32>,
      %c1_76 = arith.constant 1 : index
      %c0_77 = arith.constant 0 : index
      %c0_78 = arith.constant 0 : index
      %120 = vector.load %arg11[%c1_76, %c0_77, %c0_78] : memref<2x8x128xf32, #tpu.memory_space<vmem>>, vector<1x8x128xf32>
      %121 = vector.shape_cast %120 : vector<1x8x128xf32> to vector<8x128xf32>
      %122 = vector.shape_cast %87 : vector<8x128xf32> to vector<1x8x128xf32>
      tpu.vector_store %arg11[%c1_76, %c0_77, %c0_78], %122 {strides = array<i32>} : memref<2x8x128xf32, #tpu.memory_space<vmem>>, vector<1x8x128xf32>,
    } else {
    }
    return
  }
  func.func @transform_0(%arg0: i32, %arg1: i32) -> (i32, i32, i32) {
    %c0_i32 = arith.constant 0 : i32
    %c0_i32_0 = arith.constant 0 : i32
    return %arg1, %arg0, %c0_i32 : i32, i32, i32
  }
  func.func @transform_1(%arg0: i32, %arg1: i32) -> (i32, i32) {
    %c0_i32 = arith.constant 0 : i32
    %c0_i32_0 = arith.constant 0 : i32
    %c0_i32_1 = arith.constant 0 : i32
    return %c0_i32, %c0_i32_0 : i32, i32
  }
  func.func @transform_2(%arg0: i32, %arg1: i32) -> (i32, i32) {
    %c0_i32 = arith.constant 0 : i32
    %c0_i32_0 = arith.constant 0 : i32
    %c0_i32_1 = arith.constant 0 : i32
    return %c0_i32, %c0_i32_0 : i32, i32
  }
  func.func @transform_3(%arg0: i32, %arg1: i32) -> (i32, i32) {
    %c0_i32 = arith.constant 0 : i32
    %c0_i32_0 = arith.constant 0 : i32
    %c0_i32_1 = arith.constant 0 : i32
    return %c0_i32, %c0_i32_0 : i32, i32
  }
  func.func @transform_4(%arg0: i32, %arg1: i32) -> (i32, i32) {
    %c0_i32 = arith.constant 0 : i32
    %c0_i32_0 = arith.constant 0 : i32
    %c0_i32_1 = arith.constant 0 : i32
    return %c0_i32, %c0_i32_0 : i32, i32
  }
  func.func @transform_5(%arg0: i32, %arg1: i32) -> (i32, i32) {
    %c0_i32 = arith.constant 0 : i32
    %c0_i32_0 = arith.constant 0 : i32
    %c0_i32_1 = arith.constant 0 : i32
    return %c0_i32, %c0_i32_0 : i32, i32
  }
  func.func @transform_6(%arg0: i32, %arg1: i32) -> (i32, i32) {
    %c0_i32 = arith.constant 0 : i32
    %c0_i32_0 = arith.constant 0 : i32
    %c0_i32_1 = arith.constant 0 : i32
    return %c0_i32, %c0_i32_0 : i32, i32
  }
  func.func @transform_7(%arg0: i32, %arg1: i32) -> (i32, i32) {
    %c0_i32 = arith.constant 0 : i32
    %c0_i32_0 = arith.constant 0 : i32
    return %arg0, %c0_i32 : i32, i32
  }
  func.func @transform_8(%arg0: i32, %arg1: i32) -> (i32, i32, i32) {
    %c0_i32 = arith.constant 0 : i32
    %c0_i32_0 = arith.constant 0 : i32
    %c0_i32_1 = arith.constant 0 : i32
    return %c0_i32, %arg0, %c0_i32_0 : i32, i32, i32
  }
  func.func @transform_9(%arg0: i32, %arg1: i32) -> (i32, i32, i32) {
    %c0_i32 = arith.constant 0 : i32
    %c0_i32_0 = arith.constant 0 : i32
    %c0_i32_1 = arith.constant 0 : i32
    return %c0_i32, %arg0, %c0_i32_0 : i32, i32, i32
  }
}

</mosaic_0001>

<llo_original>
// kernel: sentiment_lstm_forward.1
$region0: #{sentiment_lstm_forward.1}
  #allocation0 [shape = 'u32[]', space=smem, size = 0x4, offset = 0x4, fixed_abs, tag = 'smem constant byte address 0x4 - core index']
  #allocation1 [shape = 'u32[144,128]{1,0:T(1,128)}', space=vmem, size = 0x12000, scoped, tag = 'internal scratch']
  #allocation2 [shape = 'f32[8,128]{1,0:T(8,128)}', space=vmem, size = 0x1000, scoped, tag = 'scratch operand']
  #allocation3 [shape = 'f32[8,128]{1,0:T(8,128)}', space=vmem, size = 0x1000, scoped, tag = 'scratch operand']
  #allocation4 [shape = 'f32[8,128]{1,0:T(8,128)}', space=vmem, size = 0x1000, scoped, tag = 'scratch operand']
  #allocation5 [shape = 'f32[8,128]{1,0:T(8,128)}', space=vmem, size = 0x1000, scoped, tag = 'scratch operand']
  #allocation6 [shape = 'bf16[8,256]{1,0:T(8,128)(2,1)}', space=vmem, size = 0x1000, scoped, tag = 'scratch operand']
  #allocation7 [shape = 'bf16[8,256]{1,0:T(8,128)(2,1)}', space=vmem, size = 0x1000, scoped, tag = 'scratch operand']
  %s0 = inlined_call_operand.vmem [shape: bf16[8,8,128], index: 0, kind: input, shape index: {}]
  %s1 = inlined_call_operand.vmem [shape: bf16[256,512], index: 1, kind: input, shape index: {}]
  %s2 = inlined_call_operand.vmem [shape: f32[1,512], index: 2, kind: input, shape index: {}]
  %s3 = inlined_call_operand.vmem [shape: bf16[256,512], index: 3, kind: input, shape index: {}]
  %s4 = inlined_call_operand.vmem [shape: f32[1,512], index: 4, kind: input, shape index: {}]
  %s5 = inlined_call_operand.vmem [shape: bf16[128,128], index: 5, kind: input, shape index: {}]
  %s6 = inlined_call_operand.vmem [shape: f32[1,128], index: 6, kind: input, shape index: {}]
  %s7 = inlined_call_operand.vmem [shape: f32[8,128], index: 7, kind: output, shape index: {0}]
  %s8 = inlined_call_operand.vmem [shape: f32[2,8,128], index: 8, kind: output, shape index: {1}]
  %s9 = inlined_call_operand.vmem [shape: f32[2,8,128], index: 9, kind: output, shape index: {2}]
  %10 = xla_tuple %s7, %s8, %s9
  %s11 = sld [smem:[#allocation0]]
  $region85: #{sentiment_lstm_forward.1} parent=0
    _
  %s13 = ssub.s32 1, %s11
  %s14 = scalar_select 0, %s13, %s11
  loop: start=0, step=1, limit=10
  $region2: #{sentiment_lstm_forward.1} parent=0 // loop_pre_header
    _
  $region3: #{sentiment_lstm_forward.1} parent=0 // loop_header
    %s16 = sphi 0, %s20
    %p17 = scmp.ge.s32.totalorder %s16, 10
    %s23 = sphi 0, %s35
    %s24 = sphi 0, %s31
    %s25 = sphi 0, %s23
    %s26 = sphi 0, %s24
    %s27 = sphi 0, %s25
    %s28 = sphi 0, %s26
    %s40 = sphi 0, %s42
    %s43 = sphi 0, %s40
    %s44 = sphi 0, %s43
    %s60 = sphi 0, %s44
    %s64 = sphi 0, %s64
    %s66 = sphi 0, %s64
    %s67 = sphi 0, %s66
    %s81 = sphi 0, %s67
    %s85 = sphi 0, %s85
    %s87 = sphi 0, %s85
    %s88 = sphi 0, %s87
    %s102 = sphi 0, %s88
    %s106 = sphi 0, %s106
    %s108 = sphi 0, %s106
    %s109 = sphi 0, %s108
    %s123 = sphi 0, %s109
    %s127 = sphi 0, %s127
    %s129 = sphi 0, %s127
    %s130 = sphi 0, %s129
    %s144 = sphi 0, %s130
    %s148 = sphi 0, %s148
    %s150 = sphi 0, %s148
    %s151 = sphi 0, %s150
    %s165 = sphi 0, %s151
    %s169 = sphi 0, %s169
    %s171 = sphi 0, %s169
    %s172 = sphi 0, %s171
    %s186 = sphi 0, %s172
    %s192 = sphi 0, %s194
    %s195 = sphi 0, %s192
    %s196 = sphi 0, %s195
    %s212 = sphi 0, %s196
    %s218 = sphi 0, %s220
    %s221 = sphi 0, %s218
    %s222 = sphi 0, %s221
    %s238 = sphi 0, %s222
    %s244 = sphi 0, %s246
    %s247 = sphi 0, %s244
    %s248 = sphi 0, %s247
    %s264 = sphi 0, %s248
  $region4: #{sentiment_lstm_forward.1} parent=0 // loop_header_branch
    %19 = sbr.rel (%p17) target = $region8
  $region5: #{sentiment_lstm_forward.1} parent=0 // loop_body
    %s21 = ssub.s32 %s16, 1
    %s22 = ssub.s32 %s16, 2
    %s29 = sadd.s32 1, %s24
    %p30 = scmp.ge.s32.totalorder %s29, 8
    %s31 = scalar_select %p30, 0, %s29
    %s32 = sadd.s32 1, %s23
    %s33 = scalar_select %p30, %s32, %s23
    %p34 = scmp.ge.s32.totalorder %s33, 1
    %s35 = scalar_select %p34, 0, %s33
    %s36 = ssub.s32 %s24, %s31
    %s37 = ssub.s32 %s23, %s35
    %s38 = sor.u32 %s36, %s37
    %p39 = scmp.eq.s32.totalorder %s38, 0
    %s41 = sadd.s32 %s40, 1
    %s42 = scalar_select %p39, %s40, %s41
    %p45 = pneg %p39
    %p46 = scmp.eq.s32.totalorder %s16, 7
    %p47 = por %p45, %p46
    %p48 = scmp.ne.s32.totalorder %s40, %s43
    %p49 = scmp.eq.s32.totalorder %s16, 0
    %p50 = por %p48, %p49
    %p51 = scmp.ne.s32.totalorder %s40, %s43
    %p52 = scmp.eq.s32.totalorder %s21, 7
    %p53 = por %p51, %p52
    %p54 = scmp.ne.s32.totalorder %s43, %s44
    %p55 = scmp.eq.s32.totalorder %s21, 0
    %p56 = por %p54, %p55
    %p57 = scmp.ne.s32.totalorder %s43, %s44
    %p58 = scmp.eq.s32.totalorder %s22, 7
    %p59 = por %p57, %p58
    %p61 = scmp.ne.s32.totalorder %s44, %s60
    %p62 = scmp.eq.s32.totalorder %s22, 0
    %p63 = por %p61, %p62
    %s65 = sadd.s32 %s64, 1
    %p68 = scmp.eq.s32.totalorder %s16, 7
    %p69 = scmp.ne.s32.totalorder %s64, %s66
    %p70 = scmp.eq.s32.totalorder %s16, 0
    %p71 = por %p69, %p70
    %p72 = scmp.ne.s32.totalorder %s64, %s66
    %p73 = scmp.eq.s32.totalorder %s21, 7
    %p74 = por %p72, %p73
    %p75 = scmp.ne.s32.totalorder %s66, %s67
    %p76 = scmp.eq.s32.totalorder %s21, 0
    %p77 = por %p75, %p76
    %p78 = scmp.ne.s32.totalorder %s66, %s67
    %p79 = scmp.eq.s32.totalorder %s22, 7
    %p80 = por %p78, %p79
    %p82 = scmp.ne.s32.totalorder %s67, %s81
    %p83 = scmp.eq.s32.totalorder %s22, 0
    %p84 = por %p82, %p83
    %s86 = sadd.s32 %s85, 1
    %p89 = scmp.eq.s32.totalorder %s16, 7
    %p90 = scmp.ne.s32.totalorder %s85, %s87
    %p91 = scmp.eq.s32.totalorder %s16, 0
    %p92 = por %p90, %p91
    %p93 = scmp.ne.s32.totalorder %s85, %s87
    %p94 = scmp.eq.s32.totalorder %s21, 7
    %p95 = por %p93, %p94
    %p96 = scmp.ne.s32.totalorder %s87, %s88
    %p97 = scmp.eq.s32.totalorder %s21, 0
    %p98 = por %p96, %p97
    %p99 = scmp.ne.s32.totalorder %s87, %s88
    %p100 = scmp.eq.s32.totalorder %s22, 7
    %p101 = por %p99, %p100
    %p103 = scmp.ne.s32.totalorder %s88, %s102
    %p104 = scmp.eq.s32.totalorder %s22, 0
    %p105 = por %p103, %p104
    %s107 = sadd.s32 %s106, 1
    %p110 = scmp.eq.s32.totalorder %s16, 7
    %p111 = scmp.ne.s32.totalorder %s106, %s108
    %p112 = scmp.eq.s32.totalorder %s16, 0
    %p113 = por %p111, %p112
    %p114 = scmp.ne.s32.totalorder %s106, %s108
    %p115 = scmp.eq.s32.totalorder %s21, 7
    %p116 = por %p114, %p115
    %p117 = scmp.ne.s32.totalorder %s108, %s109
    %p118 = scmp.eq.s32.totalorder %s21, 0
    %p119 = por %p117, %p118
    %p120 = scmp.ne.s32.totalorder %s108, %s109
    %p121 = scmp.eq.s32.totalorder %s22, 7
    %p122 = por %p120, %p121
    %p124 = scmp.ne.s32.totalorder %s109, %s123
    %p125 = scmp.eq.s32.totalorder %s22, 0
    %p126 = por %p124, %p125
    %s128 = sadd.s32 %s127, 1
    %p131 = scmp.eq.s32.totalorder %s16, 7
    %p132 = scmp.ne.s32.totalorder %s127, %s129
    %p133 = scmp.eq.s32.totalorder %s16, 0
    %p134 = por %p132, %p133
    %p135 = scmp.ne.s32.totalorder %s127, %s129
    %p136 = scmp.eq.s32.totalorder %s21, 7
    %p137 = por %p135, %p136
    %p138 = scmp.ne.s32.totalorder %s129, %s130
    %p139 = scmp.eq.s32.totalorder %s21, 0
    %p140 = por %p138, %p139
    %p141 = scmp.ne.s32.totalorder %s129, %s130
    %p142 = scmp.eq.s32.totalorder %s22, 7
    %p143 = por %p141, %p142
    %p145 = scmp.ne.s32.totalorder %s130, %s144
    %p146 = scmp.eq.s32.totalorder %s22, 0
    %p147 = por %p145, %p146
    %s149 = sadd.s32 %s148, 1
    %p152 = scmp.eq.s32.totalorder %s16, 7
    %p153 = scmp.ne.s32.totalorder %s148, %s150
    %p154 = scmp.eq.s32.totalorder %s16, 0
    %p155 = por %p153, %p154
    %p156 = scmp.ne.s32.totalorder %s148, %s150
    %p157 = scmp.eq.s32.totalorder %s21, 7
    %p158 = por %p156, %p157
    %p159 = scmp.ne.s32.totalorder %s150, %s151
    %p160 = scmp.eq.s32.totalorder %s21, 0
    %p161 = por %p159, %p160
    %p162 = scmp.ne.s32.totalorder %s150, %s151
    %p163 = scmp.eq.s32.totalorder %s22, 7
    %p164 = por %p162, %p163
    %p166 = scmp.ne.s32.totalorder %s151, %s165
    %p167 = scmp.eq.s32.totalorder %s22, 0
    %p168 = por %p166, %p167
    %s170 = sadd.s32 %s169, 1
    %p173 = scmp.eq.s32.totalorder %s16, 7
    %p174 = scmp.ne.s32.totalorder %s169, %s171
    %p175 = scmp.eq.s32.totalorder %s16, 0
    %p176 = por %p174, %p175
    %p177 = scmp.ne.s32.totalorder %s169, %s171
    %p178 = scmp.eq.s32.totalorder %s21, 7
    %p179 = por %p177, %p178
    %p180 = scmp.ne.s32.totalorder %s171, %s172
    %p181 = scmp.eq.s32.totalorder %s21, 0
    %p182 = por %p180, %p181
    %p183 = scmp.ne.s32.totalorder %s171, %s172
    %p184 = scmp.eq.s32.totalorder %s22, 7
    %p185 = por %p183, %p184
    %p187 = scmp.ne.s32.totalorder %s172, %s186
    %p188 = scmp.eq.s32.totalorder %s22, 0
    %p189 = por %p187, %p188
    %s190 = ssub.s32 %s23, %s35
    %p191 = scmp.eq.s32.totalorder %s190, 0
    %s193 = sadd.s32 %s192, 1
    %s194 = scalar_select %p191, %s192, %s193
    %p197 = pneg %p191
    %p198 = scmp.eq.s32.totalorder %s16, 7
    %p199 = por %p197, %p198
    %p200 = scmp.ne.s32.totalorder %s192, %s195
    %p201 = scmp.eq.s32.totalorder %s16, 0
    %p202 = por %p200, %p201
    %p203 = scmp.ne.s32.totalorder %s192, %s195
    %p204 = scmp.eq.s32.totalorder %s21, 7
    %p205 = por %p203, %p204
    %p206 = scmp.ne.s32.totalorder %s195, %s196
    %p207 = scmp.eq.s32.totalorder %s21, 0
    %p208 = por %p206, %p207
    %p209 = scmp.ne.s32.totalorder %s195, %s196
    %p210 = scmp.eq.s32.totalorder %s22, 7
    %p211 = por %p209, %p210
    %p213 = scmp.ne.s32.totalorder %s196, %s212
    %p214 = scmp.eq.s32.totalorder %s22, 0
    %p215 = por %p213, %p214
    %s216 = ssub.s32 %s23, %s35
    %p217 = scmp.eq.s32.totalorder %s216, 0
    %s219 = sadd.s32 %s218, 1
    %s220 = scalar_select %p217, %s218, %s219
    %p223 = pneg %p217
    %p224 = scmp.eq.s32.totalorder %s16, 7
    %p225 = por %p223, %p224
    %p226 = scmp.ne.s32.totalorder %s218, %s221
    %p227 = scmp.eq.s32.totalorder %s16, 0
    %p228 = por %p226, %p227
    %p229 = scmp.ne.s32.totalorder %s218, %s221
    %p230 = scmp.eq.s32.totalorder %s21, 7
    %p231 = por %p229, %p230
    %p232 = scmp.ne.s32.totalorder %s221, %s222
    %p233 = scmp.eq.s32.totalorder %s21, 0
    %p234 = por %p232, %p233
    %p235 = scmp.ne.s32.totalorder %s221, %s222
    %p236 = scmp.eq.s32.totalorder %s22, 7
    %p237 = por %p235, %p236
    %p239 = scmp.ne.s32.totalorder %s222, %s238
    %p240 = scmp.eq.s32.totalorder %s22, 0
    %p241 = por %p239, %p240
    %s242 = ssub.s32 %s23, %s35
    %p243 = scmp.eq.s32.totalorder %s242, 0
    %s245 = sadd.s32 %s244, 1
    %s246 = scalar_select %p243, %s244, %s245
    %p249 = pneg %p243
    %p250 = scmp.eq.s32.totalorder %s16, 7
    %p251 = por %p249, %p250
    %p252 = scmp.ne.s32.totalorder %s244, %s247
    %p253 = scmp.eq.s32.totalorder %s16, 0
    %p254 = por %p252, %p253
    %p255 = scmp.ne.s32.totalorder %s244, %s247
    %p256 = scmp.eq.s32.totalorder %s21, 7
    %p257 = por %p255, %p256
    %p258 = scmp.ne.s32.totalorder %s247, %s248
    %p259 = scmp.eq.s32.totalorder %s21, 0
    %p260 = por %p258, %p259
    %p261 = scmp.ne.s32.totalorder %s247, %s248
    %p262 = scmp.eq.s32.totalorder %s22, 7
    %p263 = por %p261, %p262
    %p265 = scmp.ne.s32.totalorder %s248, %s264
    %p266 = scmp.eq.s32.totalorder %s22, 0
    %p267 = por %p265, %p266
    %p268 = scmp.le.s32.totalorder 1, %s16
    %p269 = scmp.lt.s32.totalorder %s16, 9
    %p270 = pnand %p268, %p269
    %p271 = pneg %p270
    // Predicated region
    $region9: #{sentiment_lstm_forward.1} parent=5 // pred_check
      _
    $region10: #{sentiment_lstm_forward.1} parent=5 // pred_check_branch
      %273 = sbr.rel (%p270) target = $region12
    $region11: #{sentiment_lstm_forward.1} parent=5 // pred_region
      %s274 = ssub.s32 %s16, 1
      // Predicated region
      $region13: #{sentiment_lstm_forward.1} parent=11 // pred_check
        %p275 = pneg %p77
      $region14: #{sentiment_lstm_forward.1} parent=11 // pred_check_branch
        %277 = sbr.rel (%p275) target = $region16
      $region15: #{sentiment_lstm_forward.1} parent=11 // pred_region
        _
      $region16: #{sentiment_lstm_forward.1} parent=11 // pred_fallthru
        _
      // Predicated region
      $region17: #{sentiment_lstm_forward.1} parent=11 // pred_check
        %p278 = pneg %p98
      $region18: #{sentiment_lstm_forward.1} parent=11 // pred_check_branch
        %280 = sbr.rel (%p278) target = $region20
      $region19: #{sentiment_lstm_forward.1} parent=11 // pred_region
        _
      $region20: #{sentiment_lstm_forward.1} parent=11 // pred_fallthru
        _
      // Predicated region
      $region21: #{sentiment_lstm_forward.1} parent=11 // pred_check
        %p281 = pneg %p119
      $region22: #{sentiment_lstm_forward.1} parent=11 // pred_check_branch
        %283 = sbr.rel (%p281) target = $region24
      $region23: #{sentiment_lstm_forward.1} parent=11 // pred_region
        _
      $region24: #{sentiment_lstm_forward.1} parent=11 // pred_fallthru
        _
      // Predicated region
      $region25: #{sentiment_lstm_forward.1} parent=11 // pred_check
        %p284 = pneg %p140
      $region26: #{sentiment_lstm_forward.1} parent=11 // pred_check_branch
        %286 = sbr.rel (%p284) target = $region28
      $region27: #{sentiment_lstm_forward.1} parent=11 // pred_region
        _
      $region28: #{sentiment_lstm_forward.1} parent=11 // pred_fallthru
        _
      // Predicated region
      $region29: #{sentiment_lstm_forward.1} parent=11 // pred_check
        %p287 = pneg %p161
      $region30: #{sentiment_lstm_forward.1} parent=11 // pred_check_branch
        %289 = sbr.rel (%p287) target = $region32
      $region31: #{sentiment_lstm_forward.1} parent=11 // pred_region
        _
      $region32: #{sentiment_lstm_forward.1} parent=11 // pred_fallthru
        _
      // Predicated region
      $region33: #{sentiment_lstm_forward.1} parent=11 // pred_check
        %p290 = pneg %p182
      $region34: #{sentiment_lstm_forward.1} parent=11 // pred_check_branch
        %292 = sbr.rel (%p290) target = $region36
      $region35: #{sentiment_lstm_forward.1} parent=11 // pred_region
        _
      $region36: #{sentiment_lstm_forward.1} parent=11 // pred_fallthru
        _
    $region12: #{sentiment_lstm_forward.1} parent=5 // pred_fallthru
      _
    %p293 = scmp.lt.s32.totalorder %s16, 8
    // Predicated region
    $region37: #{sentiment_lstm_forward.1} parent=5 // pred_check
      %p294 = pneg %p293
    $region38: #{sentiment_lstm_forward.1} parent=5 // pred_check_branch
      %296 = sbr.rel (%p294) target = $region40
    $region39: #{sentiment_lstm_forward.1} parent=5 // pred_region
      // Predicated region
      $region41: #{sentiment_lstm_forward.1} parent=39 // pred_check
        %p297 = pneg %p50
      $region42: #{sentiment_lstm_forward.1} parent=39 // pred_check_branch
        %299 = sbr.rel (%p297) target = $region44
      $region43: #{sentiment_lstm_forward.1} parent=39 // pred_region
        %p300 = scmp.lt.s32.totalorder %s24, 7
        %s301 = scalar_select %p300, %s24, 7
        %p302 = scmp.lt.s32.totalorder %s23, 0
        %s303 = scalar_select %p302, %s23, 0
        %s304 = sadd.s32 %s303, %s301
        %s305 = smul.addr %s304, 4
        %s306 = scalar_lea.vmem %s0, %s305
      $region44: #{sentiment_lstm_forward.1} parent=39 // pred_fallthru
        _
    $region40: #{sentiment_lstm_forward.1} parent=5 // pred_fallthru
      _
    %p307 = scmp.le.s32.totalorder 1, %s16
    %p308 = scmp.lt.s32.totalorder %s16, 9
    %p309 = pnand %p307, %p308
    %p310 = pneg %p309
    // Predicated region
    $region45: #{sentiment_lstm_forward.1} parent=5 // pred_check
      _
    $region46: #{sentiment_lstm_forward.1} parent=5 // pred_check_branch
      %312 = sbr.rel (%p309) target = $region48
    $region47: #{sentiment_lstm_forward.1} parent=5 // pred_region
      %s313 = ssub.s32 %s16, 1
      %p314 = scmp.lt.s32.totalorder %s26, 7
      %s315 = scalar_select %p314, %s26, 7
      %p316 = scmp.lt.s32.totalorder %s25, 0
      %s317 = scalar_select %p316, %s25, 0
      %s318 = sadd.s32 %s317, %s315
      %s319 = smul.addr %s318, 4
      %s320 = scalar_lea.vmem %s0, %s319
      %p321 = pneg %p56
      %p322 = pneg %p53
      %p323 = pneg %p77
      %p324 = pneg %p74
      %p325 = pneg %p98
      %p326 = pneg %p95
      %p327 = pneg %p119
      %p328 = pneg %p116
      %p329 = pneg %p140
      %p330 = pneg %p137
      %p331 = pneg %p161
      %p332 = pneg %p158
      %p333 = pneg %p182
      %p334 = pneg %p179
      %p335 = pneg %p208
      %p336 = pneg %p205
      %p337 = scmp.lt.s32.totalorder %s25, 0
      %s338 = scalar_select %p337, %s25, 0
      %s339 = smul.addr %s338, 8
      %s340 = scalar_lea.vmem %s7, %s339
      %p341 = pneg %p234
      %p342 = pneg %p231
      %p343 = scmp.lt.s32.totalorder %s25, 0
      %s344 = scalar_select %p343, %s25, 0
      %s345 = smul.addr %s344, 8
      %s346 = scalar_lea.vmem %s8, %s345
      %p347 = pneg %p260
      %p348 = pneg %p257
      %p349 = scmp.lt.s32.totalorder %s25, 0
      %s350 = scalar_select %p349, %s25, 0
      %s351 = smul.addr %s350, 8
      %s352 = scalar_lea.vmem %s9, %s351
      %p353 = scmp.lt.s32.totalorder %s26, 7
      %s354 = scalar_select %p353, %s26, 7
      %p355 = scmp.lt.s32.totalorder %s25, 0
      %s356 = scalar_select %p355, %s25, 0
      %s357 = sadd.s32 %s356, %s354
      %s358 = smul.addr %s357, 4
      %s359 = scalar_lea.vmem %s0, %s358
      %p360 = scmp.lt.s32.totalorder %s25, 0
      %s361 = scalar_select %p360, %s25, 0
      %s362 = smul.addr %s361, 8
      %s363 = scalar_lea.vmem %s7, %s362
      %p364 = scmp.lt.s32.totalorder %s25, 0
      %s365 = scalar_select %p364, %s25, 0
      %s366 = smul.addr %s365, 8
      %s367 = scalar_lea.vmem %s8, %s366
      %p368 = scmp.lt.s32.totalorder %s25, 0
      %s369 = scalar_select %p368, %s25, 0
      %s370 = smul.addr %s369, 8
      %s371 = scalar_lea.vmem %s9, %s370
      %p373 = scmp.eq.s32.totalorder %s26, 0
      // Predicated region
      $region49: #{sentiment_lstm_forward.1} parent=47 // pred_check
        %p374 = pneg %p373
      $region50: #{sentiment_lstm_forward.1} parent=47 // pred_check_branch
        %376 = sbr.rel (%p374) target = $region52
      $region51: #{sentiment_lstm_forward.1} parent=47 // pred_region
        %377 = vst [vmem:[#allocation2] sm:$0xff] 0.0
        %378 = vst [vmem:[#allocation3] sm:$0xff] 0.0
        %379 = vst [vmem:[#allocation4] sm:$0xff] 0.0
        %380 = vst [vmem:[#allocation5] sm:$0xff] 0.0
      $region52: #{sentiment_lstm_forward.1} parent=47 // pred_fallthru
        _
      %v381 = vld [vmem:[%s359] sm:$0xf]
      %382 = vst [vmem:[#allocation6] sm:$0xf] %v381
      %v383 = vld [vmem:[#allocation2] sm:$0xff]
      %v384 = vpack.c.bf16 %v383, %v383
      %385 = vst [vmem:[#allocation6 + $0x4] sm:$0xf] %v384
      %v386 = vld [vmem:[#allocation6] sm:$0xff]
      %v387 = vld [vmem:[%s1] sm:$0xff]
      %v388 = vld [vmem:[%s1 + $0x8] sm:$0xff]
      %v389 = vld [vmem:[%s1 + $0x10] sm:$0xff]
      %v390 = vld [vmem:[%s1 + $0x18] sm:$0xff]
      %v391 = vld [vmem:[%s1 + $0x20] sm:$0xff]
      %v392 = vld [vmem:[%s1 + $0x28] sm:$0xff]
      %v393 = vld [vmem:[%s1 + $0x30] sm:$0xff]
      %v394 = vld [vmem:[%s1 + $0x38] sm:$0xff]
      %v395 = vld [vmem:[%s1 + $0x40] sm:$0xff]
      %v396 = vld [vmem:[%s1 + $0x48] sm:$0xff]
      %v397 = vld [vmem:[%s1 + $0x50] sm:$0xff]
      %v398 = vld [vmem:[%s1 + $0x58] sm:$0xff]
      %v399 = vld [vmem:[%s1 + $0x60] sm:$0xff]
      %v400 = vld [vmem:[%s1 + $0x68] sm:$0xff]
      %v401 = vld [vmem:[%s1 + $0x70] sm:$0xff]
      %v402 = vld [vmem:[%s1 + $0x78] sm:$0xff]
      %v403 = vld [vmem:[%s1 + $0x80] sm:$0xff]
      %v404 = vld [vmem:[%s1 + $0x88] sm:$0xff]
      %v405 = vld [vmem:[%s1 + $0x90] sm:$0xff]
      %v406 = vld [vmem:[%s1 + $0x98] sm:$0xff]
      %v407 = vld [vmem:[%s1 + $0xa0] sm:$0xff]
      %v408 = vld [vmem:[%s1 + $0xa8] sm:$0xff]
      %v409 = vld [vmem:[%s1 + $0xb0] sm:$0xff]
      %v410 = vld [vmem:[%s1 + $0xb8] sm:$0xff]
      %v411 = vld [vmem:[%s1 + $0xc0] sm:$0xff]
      %v412 = vld [vmem:[%s1 + $0xc8] sm:$0xff]
      %v413 = vld [vmem:[%s1 + $0xd0] sm:$0xff]
      %v414 = vld [vmem:[%s1 + $0xd8] sm:$0xff]
      %v415 = vld [vmem:[%s1 + $0xe0] sm:$0xff]
      %v416 = vld [vmem:[%s1 + $0xe8] sm:$0xff]
      %v417 = vld [vmem:[%s1 + $0xf0] sm:$0xff]
      %v418 = vld [vmem:[%s1 + $0xf8] sm:$0xff]
      %v419 = vld [vmem:[%s1 + $0x100] sm:$0xff]
      %v420 = vld [vmem:[%s1 + $0x108] sm:$0xff]
      %v421 = vld [vmem:[%s1 + $0x110] sm:$0xff]
      %v422 = vld [vmem:[%s1 + $0x118] sm:$0xff]
      %v423 = vld [vmem:[%s1 + $0x120] sm:$0xff]
      %v424 = vld [vmem:[%s1 + $0x128] sm:$0xff]
      %v425 = vld [vmem:[%s1 + $0x130] sm:$0xff]
      %v426 = vld [vmem:[%s1 + $0x138] sm:$0xff]
      %v427 = vld [vmem:[%s1 + $0x140] sm:$0xff]
      %v428 = vld [vmem:[%s1 + $0x148] sm:$0xff]
      %v429 = vld [vmem:[%s1 + $0x150] sm:$0xff]
      %v430 = vld [vmem:[%s1 + $0x158] sm:$0xff]
      %v431 = vld [vmem:[%s1 + $0x160] sm:$0xff]
      %v432 = vld [vmem:[%s1 + $0x168] sm:$0xff]
      %v433 = vld [vmem:[%s1 + $0x170] sm:$0xff]
      %v434 = vld [vmem:[%s1 + $0x178] sm:$0xff]
      %v435 = vld [vmem:[%s1 + $0x180] sm:$0xff]
      %v436 = vld [vmem:[%s1 + $0x188] sm:$0xff]
      %v437 = vld [vmem:[%s1 + $0x190] sm:$0xff]
      %v438 = vld [vmem:[%s1 + $0x198] sm:$0xff]
      %v439 = vld [vmem:[%s1 + $0x1a0] sm:$0xff]
      %v440 = vld [vmem:[%s1 + $0x1a8] sm:$0xff]
      %v441 = vld [vmem:[%s1 + $0x1b0] sm:$0xff]
      %v442 = vld [vmem:[%s1 + $0x1b8] sm:$0xff]
      %v443 = vld [vmem:[%s1 + $0x1c0] sm:$0xff]
      %v444 = vld [vmem:[%s1 + $0x1c8] sm:$0xff]
      %v445 = vld [vmem:[%s1 + $0x1d0] sm:$0xff]
      %v446 = vld [vmem:[%s1 + $0x1d8] sm:$0xff]
      %v447 = vld [vmem:[%s1 + $0x1e0] sm:$0xff]
      %v448 = vld [vmem:[%s1 + $0x1e8] sm:$0xff]
      %v449 = vld [vmem:[%s1 + $0x1f0] sm:$0xff]
      %v450 = vld [vmem:[%s1 + $0x1f8] sm:$0xff]
      %v451 = vld [vmem:[%s2] sm:$0xf]
      %v453 = vlaneseq
      %v454 = vshrl.u32 %v453, 7
      %v455 = vsub.s32 0, %v454
      %v456 = vrot.slane %v451, %v455
      %v457 = vlaneseq
      %v458 = vshrl.u32 %v457, 7
      %v459 = vsub.s32 1, %v458
      %v460 = vrot.slane %v451, %v459
      %v461 = vlaneseq
      %v462 = vshrl.u32 %v461, 7
      %v463 = vsub.s32 2, %v462
      %v464 = vrot.slane %v451, %v463
      %v465 = vlaneseq
      %v466 = vshrl.u32 %v465, 7
      %v467 = vsub.s32 3, %v466
      %v468 = vrot.slane %v451, %v467
      %v474 = vunpack.c.l.b16 %v386
      %v475 = vunpack.c.h.b16 %v386
      %v476 = vpack.c.b16 %v474, %v474
      %v477 = vpack.c.b16 %v475, %v475
      %v544 = vunpack.c.l.b16 %v387
      %v545 = vunpack.c.h.b16 %v387
      %v546 = vunpack.c.l.b16 %v388
      %v547 = vunpack.c.h.b16 %v388
      %v548 = vunpack.c.l.b16 %v389
      %v549 = vunpack.c.h.b16 %v389
      %v550 = vunpack.c.l.b16 %v390
      %v551 = vunpack.c.h.b16 %v390
      %v552 = vunpack.c.l.b16 %v391
      %v553 = vunpack.c.h.b16 %v391
      %v554 = vunpack.c.l.b16 %v392
      %v555 = vunpack.c.h.b16 %v392
      %v556 = vunpack.c.l.b16 %v393
      %v557 = vunpack.c.h.b16 %v393
      %v558 = vunpack.c.l.b16 %v394
      %v559 = vunpack.c.h.b16 %v394
      %v560 = vunpack.c.l.b16 %v395
      %v561 = vunpack.c.h.b16 %v395
      %v562 = vunpack.c.l.b16 %v396
      %v563 = vunpack.c.h.b16 %v396
      %v564 = vunpack.c.l.b16 %v397
      %v565 = vunpack.c.h.b16 %v397
      %v566 = vunpack.c.l.b16 %v398
      %v567 = vunpack.c.h.b16 %v398
      %v568 = vunpack.c.l.b16 %v399
      %v569 = vunpack.c.h.b16 %v399
      %v570 = vunpack.c.l.b16 %v400
      %v571 = vunpack.c.h.b16 %v400
      %v572 = vunpack.c.l.b16 %v401
      %v573 = vunpack.c.h.b16 %v401
      %v574 = vunpack.c.l.b16 %v402
      %v575 = vunpack.c.h.b16 %v402
      %v576 = vunpack.c.l.b16 %v403
      %v577 = vunpack.c.h.b16 %v403
      %v578 = vunpack.c.l.b16 %v404
      %v579 = vunpack.c.h.b16 %v404
      %v580 = vunpack.c.l.b16 %v405
      %v581 = vunpack.c.h.b16 %v405
      %v582 = vunpack.c.l.b16 %v406
      %v583 = vunpack.c.h.b16 %v406
      %v584 = vunpack.c.l.b16 %v407
      %v585 = vunpack.c.h.b16 %v407
      %v586 = vunpack.c.l.b16 %v408
      %v587 = vunpack.c.h.b16 %v408
      %v588 = vunpack.c.l.b16 %v409
      %v589 = vunpack.c.h.b16 %v409
      %v590 = vunpack.c.l.b16 %v410
      %v591 = vunpack.c.h.b16 %v410
      %v592 = vunpack.c.l.b16 %v411
      %v593 = vunpack.c.h.b16 %v411
      %v594 = vunpack.c.l.b16 %v412
      %v595 = vunpack.c.h.b16 %v412
      %v596 = vunpack.c.l.b16 %v413
      %v597 = vunpack.c.h.b16 %v413
      %v598 = vunpack.c.l.b16 %v414
      %v599 = vunpack.c.h.b16 %v414
      %v600 = vunpack.c.l.b16 %v415
      %v601 = vunpack.c.h.b16 %v415
      %v602 = vunpack.c.l.b16 %v416
      %v603 = vunpack.c.h.b16 %v416
      %v604 = vunpack.c.l.b16 %v417
      %v605 = vunpack.c.h.b16 %v417
      %v606 = vunpack.c.l.b16 %v418
      %v607 = vunpack.c.h.b16 %v418
      %v608 = vunpack.c.l.b16 %v419
      %v609 = vunpack.c.h.b16 %v419
      %v610 = vunpack.c.l.b16 %v420
      %v611 = vunpack.c.h.b16 %v420
      %v612 = vunpack.c.l.b16 %v421
      %v613 = vunpack.c.h.b16 %v421
      %v614 = vunpack.c.l.b16 %v422
      %v615 = vunpack.c.h.b16 %v422
      %v616 = vunpack.c.l.b16 %v423
      %v617 = vunpack.c.h.b16 %v423
      %v618 = vunpack.c.l.b16 %v424
      %v619 = vunpack.c.h.b16 %v424
      %v620 = vunpack.c.l.b16 %v425
      %v621 = vunpack.c.h.b16 %v425
      %v622 = vunpack.c.l.b16 %v426
      %v623 = vunpack.c.h.b16 %v426
      %v624 = vunpack.c.l.b16 %v427
      %v625 = vunpack.c.h.b16 %v427
      %v626 = vunpack.c.l.b16 %v428
      %v627 = vunpack.c.h.b16 %v428
      %v628 = vunpack.c.l.b16 %v429
      %v629 = vunpack.c.h.b16 %v429
      %v630 = vunpack.c.l.b16 %v430
      %v631 = vunpack.c.h.b16 %v430
      %v632 = vunpack.c.l.b16 %v431
      %v633 = vunpack.c.h.b16 %v431
      %v634 = vunpack.c.l.b16 %v432
      %v635 = vunpack.c.h.b16 %v432
      %v636 = vunpack.c.l.b16 %v433
      %v637 = vunpack.c.h.b16 %v433
      %v638 = vunpack.c.l.b16 %v434
      %v639 = vunpack.c.h.b16 %v434
      %v640 = vunpack.c.l.b16 %v435
      %v641 = vunpack.c.h.b16 %v435
      %v642 = vunpack.c.l.b16 %v436
      %v643 = vunpack.c.h.b16 %v436
      %v644 = vunpack.c.l.b16 %v437
      %v645 = vunpack.c.h.b16 %v437
      %v646 = vunpack.c.l.b16 %v438
      %v647 = vunpack.c.h.b16 %v438
      %v648 = vunpack.c.l.b16 %v439
      %v649 = vunpack.c.h.b16 %v439
      %v650 = vunpack.c.l.b16 %v440
      %v651 = vunpack.c.h.b16 %v440
      %v652 = vunpack.c.l.b16 %v441
      %v653 = vunpack.c.h.b16 %v441
      %v654 = vunpack.c.l.b16 %v442
      %v655 = vunpack.c.h.b16 %v442
      %v656 = vunpack.c.l.b16 %v443
      %v657 = vunpack.c.h.b16 %v443
      %v658 = vunpack.c.l.b16 %v444
      %v659 = vunpack.c.h.b16 %v444
      %v660 = vunpack.c.l.b16 %v445
      %v661 = vunpack.c.h.b16 %v445
      %v662 = vunpack.c.l.b16 %v446
      %v663 = vunpack.c.h.b16 %v446
      %v664 = vunpack.c.l.b16 %v447
      %v665 = vunpack.c.h.b16 %v447
      %v666 = vunpack.c.l.b16 %v448
      %v667 = vunpack.c.h.b16 %v448
      %v668 = vunpack.c.l.b16 %v449
      %v669 = vunpack.c.h.b16 %v449
      %v670 = vunpack.c.l.b16 %v450
      %v671 = vunpack.c.h.b16 %v450
      %v672 = vpack.c.b16 %v548, %v544
      %v673 = vpack.c.b16 %v549, %v545
      %v674 = vpack.c.b16 %v550, %v546
      %v675 = vpack.c.b16 %v551, %v547
      %v676 = vpack.c.b16 %v556, %v552
      %v677 = vpack.c.b16 %v557, %v553
      %v678 = vpack.c.b16 %v558, %v554
      %v679 = vpack.c.b16 %v559, %v555
      %v680 = vpack.c.b16 %v564, %v560
      %v681 = vpack.c.b16 %v565, %v561
      %v682 = vpack.c.b16 %v566, %v562
      %v683 = vpack.c.b16 %v567, %v563
      %v684 = vpack.c.b16 %v572, %v568
      %v685 = vpack.c.b16 %v573, %v569
      %v686 = vpack.c.b16 %v574, %v570
      %v687 = vpack.c.b16 %v575, %v571
      %v688 = vpack.c.b16 %v580, %v576
      %v689 = vpack.c.b16 %v581, %v577
      %v690 = vpack.c.b16 %v582, %v578
      %v691 = vpack.c.b16 %v583, %v579
      %v692 = vpack.c.b16 %v588, %v584
      %v693 = vpack.c.b16 %v589, %v585
      %v694 = vpack.c.b16 %v590, %v586
      %v695 = vpack.c.b16 %v591, %v587
      %v696 = vpack.c.b16 %v596, %v592
      %v697 = vpack.c.b16 %v597, %v593
      %v698 = vpack.c.b16 %v598, %v594
      %v699 = vpack.c.b16 %v599, %v595
      %v700 = vpack.c.b16 %v604, %v600
      %v701 = vpack.c.b16 %v605, %v601
      %v702 = vpack.c.b16 %v606, %v602
      %v703 = vpack.c.b16 %v607, %v603
      %v704 = vpack.c.b16 %v612, %v608
      %v705 = vpack.c.b16 %v613, %v609
      %v706 = vpack.c.b16 %v614, %v610
      %v707 = vpack.c.b16 %v615, %v611
      %v708 = vpack.c.b16 %v620, %v616
      %v709 = vpack.c.b16 %v621, %v617
      %v710 = vpack.c.b16 %v622, %v618
      %v711 = vpack.c.b16 %v623, %v619
      %v712 = vpack.c.b16 %v628, %v624
      %v713 = vpack.c.b16 %v629, %v625
      %v714 = vpack.c.b16 %v630, %v626
      %v715 = vpack.c.b16 %v631, %v627
      %v716 = vpack.c.b16 %v636, %v632
      %v717 = vpack.c.b16 %v637, %v633
      %v718 = vpack.c.b16 %v638, %v634
      %v719 = vpack.c.b16 %v639, %v635
      %v720 = vpack.c.b16 %v644, %v640
      %v721 = vpack.c.b16 %v645, %v641
      %v722 = vpack.c.b16 %v646, %v642
      %v723 = vpack.c.b16 %v647, %v643
      %v724 = vpack.c.b16 %v652, %v648
      %v725 = vpack.c.b16 %v653, %v649
      %v726 = vpack.c.b16 %v654, %v650
      %v727 = vpack.c.b16 %v655, %v651
      %v728 = vpack.c.b16 %v660, %v656
      %v729 = vpack.c.b16 %v661, %v657
      %v730 = vpack.c.b16 %v662, %v658
      %v731 = vpack.c.b16 %v663, %v659
      %v732 = vpack.c.b16 %v668, %v664
      %v733 = vpack.c.b16 %v669, %v665
      %v734 = vpack.c.b16 %v670, %v666
      %v735 = vpack.c.b16 %v671, %v667
      %800 = vmatprep.subr.bf16.mxu0 %v701
      %801 = vmatpush1.bf16.msra.mxu0 %v700
      %802 = vmatprep.subr.bf16.mxu0 %v697
      %803 = vmatpush1.bf16.msra.mxu0 %v696
      %804 = vmatprep.subr.bf16.mxu0 %v693
      %805 = vmatpush1.bf16.msra.mxu0 %v692
      %806 = vmatprep.subr.bf16.mxu0 %v689
      %807 = vmatpush1.bf16.msra.mxu0 %v688
      %808 = vmatprep.subr.bf16.mxu0 %v685
      %809 = vmatpush1.bf16.msra.mxu0 %v684
      %810 = vmatprep.subr.bf16.mxu0 %v681
      %811 = vmatpush1.bf16.msra.mxu0 %v680
      %812 = vmatprep.subr.bf16.mxu0 %v677
      %813 = vmatpush1.bf16.msra.mxu0 %v676
      %814 = vmatprep.subr.bf16.mxu0 %v673
      %815 = vmatpush1.bf16.msra.mxu0 %v672
      %816 = vmatprep.subr.bf16.mxu0 %v733
      %817 = vmatpush2.bf16.msra.mxu0 %v732
      %818 = vmatprep.subr.bf16.mxu0 %v729
      %819 = vmatpush2.bf16.msra.mxu0 %v728
      %820 = vmatprep.subr.bf16.mxu0 %v725
      %821 = vmatpush2.bf16.msra.mxu0 %v724
      %822 = vmatprep.subr.bf16.mxu0 %v721
      %823 = vmatpush2.bf16.msra.mxu0 %v720
      %824 = vmatprep.subr.bf16.mxu0 %v717
      %825 = vmatpush2.bf16.msra.mxu0 %v716
      %826 = vmatprep.subr.bf16.mxu0 %v713
      %827 = vmatpush2.bf16.msra.mxu0 %v712
      %828 = vmatprep.subr.bf16.mxu0 %v709
      %829 = vmatpush2.bf16.msra.mxu0 %v708
      %830 = vmatprep.subr.bf16.mxu0 %v705
      %831 = vmatpush2.bf16.msra.mxu0 %v704
      %832 = vmatprep.mubr.bf16.mxu0 %v477
      %833 = vmatmul.mubr.bf16.gmra.mxu0 %v476
      %v834 = vpop.f32.mrf.mxu0
      %v835 = vadd.f32 %v456, %v834
      %v836 = vpop.f32.mrf.mxu0
      %v837 = vadd.f32 %v460, %v836
      %v838 = vpop.f32.mrf.mxu0
      %v839 = vpop.f32.mrf.mxu0
      %840 = vdwg.mxu0
      %841 = vmatprep.subr.bf16.mxu0 %v703
      %842 = vmatpush1.bf16.msra.mxu0 %v702
      %843 = vmatprep.subr.bf16.mxu0 %v699
      %844 = vmatpush1.bf16.msra.mxu0 %v698
      %845 = vmatprep.subr.bf16.mxu0 %v695
      %846 = vmatpush1.bf16.msra.mxu0 %v694
      %847 = vmatprep.subr.bf16.mxu0 %v691
      %848 = vmatpush1.bf16.msra.mxu0 %v690
      %849 = vmatprep.subr.bf16.mxu0 %v687
      %850 = vmatpush1.bf16.msra.mxu0 %v686
      %851 = vmatprep.subr.bf16.mxu0 %v683
      %852 = vmatpush1.bf16.msra.mxu0 %v682
      %853 = vmatprep.subr.bf16.mxu0 %v679
      %854 = vmatpush1.bf16.msra.mxu0 %v678
      %855 = vmatprep.subr.bf16.mxu0 %v675
      %856 = vmatpush1.bf16.msra.mxu0 %v674
      %857 = vmatprep.subr.bf16.mxu0 %v735
      %858 = vmatpush2.bf16.msra.mxu0 %v734
      %859 = vmatprep.subr.bf16.mxu0 %v731
      %860 = vmatpush2.bf16.msra.mxu0 %v730
      %861 = vmatprep.subr.bf16.mxu0 %v727
      %862 = vmatpush2.bf16.msra.mxu0 %v726
      %863 = vmatprep.subr.bf16.mxu0 %v723
      %864 = vmatpush2.bf16.msra.mxu0 %v722
      %865 = vmatprep.subr.bf16.mxu0 %v719
      %866 = vmatpush2.bf16.msra.mxu0 %v718
      %867 = vmatprep.subr.bf16.mxu0 %v715
      %868 = vmatpush2.bf16.msra.mxu0 %v714
      %869 = vmatprep.subr.bf16.mxu0 %v711
      %870 = vmatpush2.bf16.msra.mxu0 %v710
      %871 = vmatprep.subr.bf16.mxu0 %v707
      %872 = vmatpush2.bf16.msra.mxu0 %v706
      %873 = vmatprep.mubr.bf16.mxu0 %v477
      %874 = vmatmul.mubr.bf16.gmra.mxu0 %v476
      %v875 = vpop.f32.mrf.mxu0
      %v876 = vadd.f32 %v464, %v875
      %v877 = vpop.f32.mrf.mxu0
      %v878 = vadd.f32 %v468, %v877
      %v879 = vpop.f32.mrf.mxu0
      %v880 = vpop.f32.mrf.mxu0
      %881 = vdwg.mxu0
      %v882 = vld [vmem:[#allocation3] sm:$0xff]
      %v883 = vmul.f32 %v835, 0.5
      %v884 = vtanh.pop %v883
      %v885 = vmul.f32 %v884, 0.5
      %v886 = vadd.f32 %v885, 0.5
      %v887 = vmul.f32 %v837, 0.5
      %v888 = vtanh.pop %v887
      %v889 = vmul.f32 %v888, 0.5
      %v890 = vadd.f32 %v889, 0.5
      %v891 = vtanh.pop %v876
      %v892 = vmul.f32 %v878, 0.5
      %v893 = vtanh.pop %v892
      %v894 = vmul.f32 %v893, 0.5
      %v895 = vadd.f32 %v894, 0.5
      %v896 = vmul.f32 %v890, %v882
      %v897 = vmul.f32 %v886, %v891
      %v898 = vadd.f32 %v896, %v897
      %v899 = vtanh.pop %v898
      %v900 = vmul.f32 %v895, %v899
      %v901 = vpack.c.bf16 %v900, %v900
      %902 = vst [vmem:[#allocation7] sm:$0xf] %v901
      %v903 = vld [vmem:[#allocation4] sm:$0xff]
      %v904 = vpack.c.bf16 %v903, %v903
      %905 = vst [vmem:[#allocation7 + $0x4] sm:$0xf] %v904
      %v906 = vld [vmem:[#allocation7] sm:$0xff]
      %v907 = vld [vmem:[%s3] sm:$0xff]
      %v908 = vld [vmem:[%s3 + $0x8] sm:$0xff]
      %v909 = vld [vmem:[%s3 + $0x10] sm:$0xff]
      %v910 = vld [vmem:[%s3 + $0x18] sm:$0xff]
      %v911 = vld [vmem:[%s3 + $0x20] sm:$0xff]
      %v912 = vld [vmem:[%s3 + $0x28] sm:$0xff]
      %v913 = vld [vmem:[%s3 + $0x30] sm:$0xff]
      %v914 = vld [vmem:[%s3 + $0x38] sm:$0xff]
      %v915 = vld [vmem:[%s3 + $0x40] sm:$0xff]
      %v916 = vld [vmem:[%s3 + $0x48] sm:$0xff]
      %v917 = vld [vmem:[%s3 + $0x50] sm:$0xff]
      %v918 = vld [vmem:[%s3 + $0x58] sm:$0xff]
      %v919 = vld [vmem:[%s3 + $0x60] sm:$0xff]
      %v920 = vld [vmem:[%s3 + $0x68] sm:$0xff]
      %v921 = vld [vmem:[%s3 + $0x70] sm:$0xff]
      %v922 = vld [vmem:[%s3 + $0x78] sm:$0xff]
      %v923 = vld [vmem:[%s3 + $0x80] sm:$0xff]
      %v924 = vld [vmem:[%s3 + $0x88] sm:$0xff]
      %v925 = vld [vmem:[%s3 + $0x90] sm:$0xff]
      %v926 = vld [vmem:[%s3 + $0x98] sm:$0xff]
      %v927 = vld [vmem:[%s3 + $0xa0] sm:$0xff]
      %v928 = vld [vmem:[%s3 + $0xa8] sm:$0xff]
      %v929 = vld [vmem:[%s3 + $0xb0] sm:$0xff]
      %v930 = vld [vmem:[%s3 + $0xb8] sm:$0xff]
      %v931 = vld [vmem:[%s3 + $0xc0] sm:$0xff]
      %v932 = vld [vmem:[%s3 + $0xc8] sm:$0xff]
      %v933 = vld [vmem:[%s3 + $0xd0] sm:$0xff]
      %v934 = vld [vmem:[%s3 + $0xd8] sm:$0xff]
      %v935 = vld [vmem:[%s3 + $0xe0] sm:$0xff]
      %v936 = vld [vmem:[%s3 + $0xe8] sm:$0xff]
      %v937 = vld [vmem:[%s3 + $0xf0] sm:$0xff]
      %v938 = vld [vmem:[%s3 + $0xf8] sm:$0xff]
      %v939 = vld [vmem:[%s3 + $0x100] sm:$0xff]
      %v940 = vld [vmem:[%s3 + $0x108] sm:$0xff]
      %v941 = vld [vmem:[%s3 + $0x110] sm:$0xff]
      %v942 = vld [vmem:[%s3 + $0x118] sm:$0xff]
      %v943 = vld [vmem:[%s3 + $0x120] sm:$0xff]
      %v944 = vld [vmem:[%s3 + $0x128] sm:$0xff]
      %v945 = vld [vmem:[%s3 + $0x130] sm:$0xff]
      %v946 = vld [vmem:[%s3 + $0x138] sm:$0xff]
      %v947 = vld [vmem:[%s3 + $0x140] sm:$0xff]
      %v948 = vld [vmem:[%s3 + $0x148] sm:$0xff]
      %v949 = vld [vmem:[%s3 + $0x150] sm:$0xff]
      %v950 = vld [vmem:[%s3 + $0x158] sm:$0xff]
      %v951 = vld [vmem:[%s3 + $0x160] sm:$0xff]
      %v952 = vld [vmem:[%s3 + $0x168] sm:$0xff]
      %v953 = vld [vmem:[%s3 + $0x170] sm:$0xff]
      %v954 = vld [vmem:[%s3 + $0x178] sm:$0xff]
      %v955 = vld [vmem:[%s3 + $0x180] sm:$0xff]
      %v956 = vld [vmem:[%s3 + $0x188] sm:$0xff]
      %v957 = vld [vmem:[%s3 + $0x190] sm:$0xff]
      %v958 = vld [vmem:[%s3 + $0x198] sm:$0xff]
      %v959 = vld [vmem:[%s3 + $0x1a0] sm:$0xff]
      %v960 = vld [vmem:[%s3 + $0x1a8] sm:$0xff]
      %v961 = vld [vmem:[%s3 + $0x1b0] sm:$0xff]
      %v962 = vld [vmem:[%s3 + $0x1b8] sm:$0xff]
      %v963 = vld [vmem:[%s3 + $0x1c0] sm:$0xff]
      %v964 = vld [vmem:[%s3 + $0x1c8] sm:$0xff]
      %v965 = vld [vmem:[%s3 + $0x1d0] sm:$0xff]
      %v966 = vld [vmem:[%s3 + $0x1d8] sm:$0xff]
      %v967 = vld [vmem:[%s3 + $0x1e0] sm:$0xff]
      %v968 = vld [vmem:[%s3 + $0x1e8] sm:$0xff]
      %v969 = vld [vmem:[%s3 + $0x1f0] sm:$0xff]
      %v970 = vld [vmem:[%s3 + $0x1f8] sm:$0xff]
      %v971 = vld [vmem:[%s4] sm:$0xf]
      %v973 = vlaneseq
      %v974 = vshrl.u32 %v973, 7
      %v975 = vsub.s32 0, %v974
      %v976 = vrot.slane %v971, %v975
      %v977 = vlaneseq
      %v978 = vshrl.u32 %v977, 7
      %v979 = vsub.s32 1, %v978
      %v980 = vrot.slane %v971, %v979
      %v981 = vlaneseq
      %v982 = vshrl.u32 %v981, 7
      %v983 = vsub.s32 2, %v982
      %v984 = vrot.slane %v971, %v983
      %v985 = vlaneseq
      %v986 = vshrl.u32 %v985, 7
      %v987 = vsub.s32 3, %v986
      %v988 = vrot.slane %v971, %v987
      %v994 = vunpack.c.l.b16 %v906
      %v995 = vunpack.c.h.b16 %v906
      %v996 = vpack.c.b16 %v994, %v994
      %v997 = vpack.c.b16 %v995, %v995
      %v1064 = vunpack.c.l.b16 %v907
      %v1065 = vunpack.c.h.b16 %v907
      %v1066 = vunpack.c.l.b16 %v908
      %v1067 = vunpack.c.h.b16 %v908
      %v1068 = vunpack.c.l.b16 %v909
      %v1069 = vunpack.c.h.b16 %v909
      %v1070 = vunpack.c.l.b16 %v910
      %v1071 = vunpack.c.h.b16 %v910
      %v1072 = vunpack.c.l.b16 %v911
      %v1073 = vunpack.c.h.b16 %v911
      %v1074 = vunpack.c.l.b16 %v912
      %v1075 = vunpack.c.h.b16 %v912
      %v1076 = vunpack.c.l.b16 %v913
      %v1077 = vunpack.c.h.b16 %v913
      %v1078 = vunpack.c.l.b16 %v914
      %v1079 = vunpack.c.h.b16 %v914
      %v1080 = vunpack.c.l.b16 %v915
      %v1081 = vunpack.c.h.b16 %v915
      %v1082 = vunpack.c.l.b16 %v916
      %v1083 = vunpack.c.h.b16 %v916
      %v1084 = vunpack.c.l.b16 %v917
      %v1085 = vunpack.c.h.b16 %v917
      %v1086 = vunpack.c.l.b16 %v918
      %v1087 = vunpack.c.h.b16 %v918
      %v1088 = vunpack.c.l.b16 %v919
      %v1089 = vunpack.c.h.b16 %v919
      %v1090 = vunpack.c.l.b16 %v920
      %v1091 = vunpack.c.h.b16 %v920
      %v1092 = vunpack.c.l.b16 %v921
      %v1093 = vunpack.c.h.b16 %v921
      %v1094 = vunpack.c.l.b16 %v922
      %v1095 = vunpack.c.h.b16 %v922
      %v1096 = vunpack.c.l.b16 %v923
      %v1097 = vunpack.c.h.b16 %v923
      %v1098 = vunpack.c.l.b16 %v924
      %v1099 = vunpack.c.h.b16 %v924
      %v1100 = vunpack.c.l.b16 %v925
      %v1101 = vunpack.c.h.b16 %v925
      %v1102 = vunpack.c.l.b16 %v926
      %v1103 = vunpack.c.h.b16 %v926
      %v1104 = vunpack.c.l.b16 %v927
      %v1105 = vunpack.c.h.b16 %v927
      %v1106 = vunpack.c.l.b16 %v928
      %v1107 = vunpack.c.h.b16 %v928
      %v1108 = vunpack.c.l.b16 %v929
      %v1109 = vunpack.c.h.b16 %v929
      %v1110 = vunpack.c.l.b16 %v930
      %v1111 = vunpack.c.h.b16 %v930
      %v1112 = vunpack.c.l.b16 %v931
      %v1113 = vunpack.c.h.b16 %v931
      %v1114 = vunpack.c.l.b16 %v932
      %v1115 = vunpack.c.h.b16 %v932
      %v1116 = vunpack.c.l.b16 %v933
      %v1117 = vunpack.c.h.b16 %v933
      %v1118 = vunpack.c.l.b16 %v934
      %v1119 = vunpack.c.h.b16 %v934
      %v1120 = vunpack.c.l.b16 %v935
      %v1121 = vunpack.c.h.b16 %v935
      %v1122 = vunpack.c.l.b16 %v936
      %v1123 = vunpack.c.h.b16 %v936
      %v1124 = vunpack.c.l.b16 %v937
      %v1125 = vunpack.c.h.b16 %v937
      %v1126 = vunpack.c.l.b16 %v938
      %v1127 = vunpack.c.h.b16 %v938
      %v1128 = vunpack.c.l.b16 %v939
      %v1129 = vunpack.c.h.b16 %v939
      %v1130 = vunpack.c.l.b16 %v940
      %v1131 = vunpack.c.h.b16 %v940
      %v1132 = vunpack.c.l.b16 %v941
      %v1133 = vunpack.c.h.b16 %v941
      %v1134 = vunpack.c.l.b16 %v942
      %v1135 = vunpack.c.h.b16 %v942
      %v1136 = vunpack.c.l.b16 %v943
      %v1137 = vunpack.c.h.b16 %v943
      %v1138 = vunpack.c.l.b16 %v944
      %v1139 = vunpack.c.h.b16 %v944
      %v1140 = vunpack.c.l.b16 %v945
      %v1141 = vunpack.c.h.b16 %v945
      %v1142 = vunpack.c.l.b16 %v946
      %v1143 = vunpack.c.h.b16 %v946
      %v1144 = vunpack.c.l.b16 %v947
      %v1145 = vunpack.c.h.b16 %v947
      %v1146 = vunpack.c.l.b16 %v948
      %v1147 = vunpack.c.h.b16 %v948
      %v1148 = vunpack.c.l.b16 %v949
      %v1149 = vunpack.c.h.b16 %v949
      %v1150 = vunpack.c.l.b16 %v950
      %v1151 = vunpack.c.h.b16 %v950
      %v1152 = vunpack.c.l.b16 %v951
      %v1153 = vunpack.c.h.b16 %v951
      %v1154 = vunpack.c.l.b16 %v952
      %v1155 = vunpack.c.h.b16 %v952
      %v1156 = vunpack.c.l.b16 %v953
      %v1157 = vunpack.c.h.b16 %v953
      %v1158 = vunpack.c.l.b16 %v954
      %v1159 = vunpack.c.h.b16 %v954
      %v1160 = vunpack.c.l.b16 %v955
      %v1161 = vunpack.c.h.b16 %v955
      %v1162 = vunpack.c.l.b16 %v956
      %v1163 = vunpack.c.h.b16 %v956
      %v1164 = vunpack.c.l.b16 %v957
      %v1165 = vunpack.c.h.b16 %v957
      %v1166 = vunpack.c.l.b16 %v958
      %v1167 = vunpack.c.h.b16 %v958
      %v1168 = vunpack.c.l.b16 %v959
      %v1169 = vunpack.c.h.b16 %v959
      %v1170 = vunpack.c.l.b16 %v960
      %v1171 = vunpack.c.h.b16 %v960
      %v1172 = vunpack.c.l.b16 %v961
      %v1173 = vunpack.c.h.b16 %v961
      %v1174 = vunpack.c.l.b16 %v962
      %v1175 = vunpack.c.h.b16 %v962
      %v1176 = vunpack.c.l.b16 %v963
      %v1177 = vunpack.c.h.b16 %v963
      %v1178 = vunpack.c.l.b16 %v964
      %v1179 = vunpack.c.h.b16 %v964
      %v1180 = vunpack.c.l.b16 %v965
      %v1181 = vunpack.c.h.b16 %v965
      %v1182 = vunpack.c.l.b16 %v966
      %v1183 = vunpack.c.h.b16 %v966
      %v1184 = vunpack.c.l.b16 %v967
      %v1185 = vunpack.c.h.b16 %v967
      %v1186 = vunpack.c.l.b16 %v968
      %v1187 = vunpack.c.h.b16 %v968
      %v1188 = vunpack.c.l.b16 %v969
      %v1189 = vunpack.c.h.b16 %v969
      %v1190 = vunpack.c.l.b16 %v970
      %v1191 = vunpack.c.h.b16 %v970
      %v1192 = vpack.c.b16 %v1068, %v1064
      %v1193 = vpack.c.b16 %v1069, %v1065
      %v1194 = vpack.c.b16 %v1070, %v1066
      %v1195 = vpack.c.b16 %v1071, %v1067
      %v1196 = vpack.c.b16 %v1076, %v1072
      %v1197 = vpack.c.b16 %v1077, %v1073
      %v1198 = vpack.c.b16 %v1078, %v1074
      %v1199 = vpack.c.b16 %v1079, %v1075
      %v1200 = vpack.c.b16 %v1084, %v1080
      %v1201 = vpack.c.b16 %v1085, %v1081
      %v1202 = vpack.c.b16 %v1086, %v1082
      %v1203 = vpack.c.b16 %v1087, %v1083
      %v1204 = vpack.c.b16 %v1092, %v1088
      %v1205 = vpack.c.b16 %v1093, %v1089
      %v1206 = vpack.c.b16 %v1094, %v1090
      %v1207 = vpack.c.b16 %v1095, %v1091
      %v1208 = vpack.c.b16 %v1100, %v1096
      %v1209 = vpack.c.b16 %v1101, %v1097
      %v1210 = vpack.c.b16 %v1102, %v1098
      %v1211 = vpack.c.b16 %v1103, %v1099
      %v1212 = vpack.c.b16 %v1108, %v1104
      %v1213 = vpack.c.b16 %v1109, %v1105
      %v1214 = vpack.c.b16 %v1110, %v1106
      %v1215 = vpack.c.b16 %v1111, %v1107
      %v1216 = vpack.c.b16 %v1116, %v1112
      %v1217 = vpack.c.b16 %v1117, %v1113
      %v1218 = vpack.c.b16 %v1118, %v1114
      %v1219 = vpack.c.b16 %v1119, %v1115
      %v1220 = vpack.c.b16 %v1124, %v1120
      %v1221 = vpack.c.b16 %v1125, %v1121
      %v1222 = vpack.c.b16 %v1126, %v1122
      %v1223 = vpack.c.b16 %v1127, %v1123
      %v1224 = vpack.c.b16 %v1132, %v1128
      %v1225 = vpack.c.b16 %v1133, %v1129
      %v1226 = vpack.c.b16 %v1134, %v1130
      %v1227 = vpack.c.b16 %v1135, %v1131
      %v1228 = vpack.c.b16 %v1140, %v1136
      %v1229 = vpack.c.b16 %v1141, %v1137
      %v1230 = vpack.c.b16 %v1142, %v1138
      %v1231 = vpack.c.b16 %v1143, %v1139
      %v1232 = vpack.c.b16 %v1148, %v1144
      %v1233 = vpack.c.b16 %v1149, %v1145
      %v1234 = vpack.c.b16 %v1150, %v1146
      %v1235 = vpack.c.b16 %v1151, %v1147
      %v1236 = vpack.c.b16 %v1156, %v1152
      %v1237 = vpack.c.b16 %v1157, %v1153
      %v1238 = vpack.c.b16 %v1158, %v1154
      %v1239 = vpack.c.b16 %v1159, %v1155
      %v1240 = vpack.c.b16 %v1164, %v1160
      %v1241 = vpack.c.b16 %v1165, %v1161
      %v1242 = vpack.c.b16 %v1166, %v1162
      %v1243 = vpack.c.b16 %v1167, %v1163
      %v1244 = vpack.c.b16 %v1172, %v1168
      %v1245 = vpack.c.b16 %v1173, %v1169
      %v1246 = vpack.c.b16 %v1174, %v1170
      %v1247 = vpack.c.b16 %v1175, %v1171
      %v1248 = vpack.c.b16 %v1180, %v1176
      %v1249 = vpack.c.b16 %v1181, %v1177
      %v1250 = vpack.c.b16 %v1182, %v1178
      %v1251 = vpack.c.b16 %v1183, %v1179
      %v1252 = vpack.c.b16 %v1188, %v1184
      %v1253 = vpack.c.b16 %v1189, %v1185
      %v1254 = vpack.c.b16 %v1190, %v1186
      %v1255 = vpack.c.b16 %v1191, %v1187
      %1320 = vmatprep.subr.bf16.mxu0 %v1221
      %1321 = vmatpush1.bf16.msra.mxu0 %v1220
      %1322 = vmatprep.subr.bf16.mxu0 %v1217
      %1323 = vmatpush1.bf16.msra.mxu0 %v1216
      %1324 = vmatprep.subr.bf16.mxu0 %v1213
      %1325 = vmatpush1.bf16.msra.mxu0 %v1212
      %1326 = vmatprep.subr.bf16.mxu0 %v1209
      %1327 = vmatpush1.bf16.msra.mxu0 %v1208
      %1328 = vmatprep.subr.bf16.mxu0 %v1205
      %1329 = vmatpush1.bf16.msra.mxu0 %v1204
      %1330 = vmatprep.subr.bf16.mxu0 %v1201
      %1331 = vmatpush1.bf16.msra.mxu0 %v1200
      %1332 = vmatprep.subr.bf16.mxu0 %v1197
      %1333 = vmatpush1.bf16.msra.mxu0 %v1196
      %1334 = vmatprep.subr.bf16.mxu0 %v1193
      %1335 = vmatpush1.bf16.msra.mxu0 %v1192
      %1336 = vmatprep.subr.bf16.mxu0 %v1253
      %1337 = vmatpush2.bf16.msra.mxu0 %v1252
      %1338 = vmatprep.subr.bf16.mxu0 %v1249
      %1339 = vmatpush2.bf16.msra.mxu0 %v1248
      %1340 = vmatprep.subr.bf16.mxu0 %v1245
      %1341 = vmatpush2.bf16.msra.mxu0 %v1244
      %1342 = vmatprep.subr.bf16.mxu0 %v1241
      %1343 = vmatpush2.bf16.msra.mxu0 %v1240
      %1344 = vmatprep.subr.bf16.mxu0 %v1237
      %1345 = vmatpush2.bf16.msra.mxu0 %v1236
      %1346 = vmatprep.subr.bf16.mxu0 %v1233
      %1347 = vmatpush2.bf16.msra.mxu0 %v1232
      %1348 = vmatprep.subr.bf16.mxu0 %v1229
      %1349 = vmatpush2.bf16.msra.mxu0 %v1228
      %1350 = vmatprep.subr.bf16.mxu0 %v1225
      %1351 = vmatpush2.bf16.msra.mxu0 %v1224
      %1352 = vmatprep.mubr.bf16.mxu0 %v997
      %1353 = vmatmul.mubr.bf16.gmra.mxu0 %v996
      %v1354 = vpop.f32.mrf.mxu0
      %v1355 = vadd.f32 %v976, %v1354
      %v1356 = vpop.f32.mrf.mxu0
      %v1357 = vadd.f32 %v980, %v1356
      %v1358 = vpop.f32.mrf.mxu0
      %v1359 = vpop.f32.mrf.mxu0
      %1360 = vdwg.mxu0
      %1361 = vmatprep.subr.bf16.mxu0 %v1223
      %1362 = vmatpush1.bf16.msra.mxu0 %v1222
      %1363 = vmatprep.subr.bf16.mxu0 %v1219
      %1364 = vmatpush1.bf16.msra.mxu0 %v1218
      %1365 = vmatprep.subr.bf16.mxu0 %v1215
      %1366 = vmatpush1.bf16.msra.mxu0 %v1214
      %1367 = vmatprep.subr.bf16.mxu0 %v1211
      %1368 = vmatpush1.bf16.msra.mxu0 %v1210
      %1369 = vmatprep.subr.bf16.mxu0 %v1207
      %1370 = vmatpush1.bf16.msra.mxu0 %v1206
      %1371 = vmatprep.subr.bf16.mxu0 %v1203
      %1372 = vmatpush1.bf16.msra.mxu0 %v1202
      %1373 = vmatprep.subr.bf16.mxu0 %v1199
      %1374 = vmatpush1.bf16.msra.mxu0 %v1198
      %1375 = vmatprep.subr.bf16.mxu0 %v1195
      %1376 = vmatpush1.bf16.msra.mxu0 %v1194
      %1377 = vmatprep.subr.bf16.mxu0 %v1255
      %1378 = vmatpush2.bf16.msra.mxu0 %v1254
      %1379 = vmatprep.subr.bf16.mxu0 %v1251
      %1380 = vmatpush2.bf16.msra.mxu0 %v1250
      %1381 = vmatprep.subr.bf16.mxu0 %v1247
      %1382 = vmatpush2.bf16.msra.mxu0 %v1246
      %1383 = vmatprep.subr.bf16.mxu0 %v1243
      %1384 = vmatpush2.bf16.msra.mxu0 %v1242
      %1385 = vmatprep.subr.bf16.mxu0 %v1239
      %1386 = vmatpush2.bf16.msra.mxu0 %v1238
      %1387 = vmatprep.subr.bf16.mxu0 %v1235
      %1388 = vmatpush2.bf16.msra.mxu0 %v1234
      %1389 = vmatprep.subr.bf16.mxu0 %v1231
      %1390 = vmatpush2.bf16.msra.mxu0 %v1230
      %1391 = vmatprep.subr.bf16.mxu0 %v1227
      %1392 = vmatpush2.bf16.msra.mxu0 %v1226
      %1393 = vmatprep.mubr.bf16.mxu0 %v997
      %1394 = vmatmul.mubr.bf16.gmra.mxu0 %v996
      %v1395 = vpop.f32.mrf.mxu0
      %v1396 = vadd.f32 %v984, %v1395
      %v1397 = vpop.f32.mrf.mxu0
      %v1398 = vadd.f32 %v988, %v1397
      %v1399 = vpop.f32.mrf.mxu0
      %v1400 = vpop.f32.mrf.mxu0
      %1401 = vdwg.mxu0
      %v1402 = vld [vmem:[#allocation5] sm:$0xff]
      %v1403 = vmul.f32 %v1355, 0.5
      %v1404 = vtanh.pop %v1403
      %v1405 = vmul.f32 %v1404, 0.5
      %v1406 = vadd.f32 %v1405, 0.5
      %v1407 = vmul.f32 %v1357, 0.5
      %v1408 = vtanh.pop %v1407
      %v1409 = vmul.f32 %v1408, 0.5
      %v1410 = vadd.f32 %v1409, 0.5
      %v1411 = vtanh.pop %v1396
      %v1412 = vmul.f32 %v1398, 0.5
      %v1413 = vtanh.pop %v1412
      %v1414 = vmul.f32 %v1413, 0.5
      %v1415 = vadd.f32 %v1414, 0.5
      %v1416 = vmul.f32 %v1410, %v1402
      %v1417 = vmul.f32 %v1406, %v1411
      %v1418 = vadd.f32 %v1416, %v1417
      %v1419 = vtanh.pop %v1418
      %v1420 = vmul.f32 %v1415, %v1419
      %1421 = vst [vmem:[#allocation2] sm:$0xff] %v900
      %1422 = vst [vmem:[#allocation3] sm:$0xff] %v898
      %1423 = vst [vmem:[#allocation4] sm:$0xff] %v1420
      %1424 = vst [vmem:[#allocation5] sm:$0xff] %v1418
      %p1425 = scmp.eq.s32.totalorder %s26, 7
      // Predicated region
      $region53: #{sentiment_lstm_forward.1} parent=47 // pred_check
        %p1426 = pneg %p1425
      $region54: #{sentiment_lstm_forward.1} parent=47 // pred_check_branch
        %1428 = sbr.rel (%p1426) target = $region56
      $region55: #{sentiment_lstm_forward.1} parent=47 // pred_region
        %v1429 = vpack.c.bf16 %v1420, %v1420
        %v1430 = vld [vmem:[%s5] sm:$0xf]
        %v1431 = vld [vmem:[%s5 + $0x4] sm:$0xf]
        %v1432 = vld [vmem:[%s5 + $0x8] sm:$0xf]
        %v1433 = vld [vmem:[%s5 + $0xc] sm:$0xf]
        %v1434 = vld [vmem:[%s5 + $0x10] sm:$0xf]
        %v1435 = vld [vmem:[%s5 + $0x14] sm:$0xf]
        %v1436 = vld [vmem:[%s5 + $0x18] sm:$0xf]
        %v1437 = vld [vmem:[%s5 + $0x1c] sm:$0xf]
        %v1438 = vld [vmem:[%s5 + $0x20] sm:$0xf]
        %v1439 = vld [vmem:[%s5 + $0x24] sm:$0xf]
        %v1440 = vld [vmem:[%s5 + $0x28] sm:$0xf]
        %v1441 = vld [vmem:[%s5 + $0x2c] sm:$0xf]
        %v1442 = vld [vmem:[%s5 + $0x30] sm:$0xf]
        %v1443 = vld [vmem:[%s5 + $0x34] sm:$0xf]
        %v1444 = vld [vmem:[%s5 + $0x38] sm:$0xf]
        %v1445 = vld [vmem:[%s5 + $0x3c] sm:$0xf]
        %v1446 = vld [vmem:[%s6] sm:$0x1]
        %v1448 = vlaneseq
        %v1449 = vshrl.u32 %v1448, 7
        %v1450 = vsub.s32 0, %v1449
        %v1451 = vrot.slane %v1446, %v1450
        %v1469 = vunpack.c.l.b16 %v1430
        %v1470 = vunpack.c.l.b16 %v1431
        %v1471 = vunpack.c.l.b16 %v1432
        %v1472 = vunpack.c.l.b16 %v1433
        %v1473 = vunpack.c.l.b16 %v1434
        %v1474 = vunpack.c.l.b16 %v1435
        %v1475 = vunpack.c.l.b16 %v1436
        %v1476 = vunpack.c.l.b16 %v1437
        %v1477 = vunpack.c.l.b16 %v1438
        %v1478 = vunpack.c.l.b16 %v1439
        %v1479 = vunpack.c.l.b16 %v1440
        %v1480 = vunpack.c.l.b16 %v1441
        %v1481 = vunpack.c.l.b16 %v1442
        %v1482 = vunpack.c.l.b16 %v1443
        %v1483 = vunpack.c.l.b16 %v1444
        %v1484 = vunpack.c.l.b16 %v1445
        %v1485 = vpack.c.b16 %v1470, %v1469
        %v1486 = vpack.c.b16 %v1472, %v1471
        %v1487 = vpack.c.b16 %v1474, %v1473
        %v1488 = vpack.c.b16 %v1476, %v1475
        %v1489 = vpack.c.b16 %v1478, %v1477
        %v1490 = vpack.c.b16 %v1480, %v1479
        %v1491 = vpack.c.b16 %v1482, %v1481
        %v1492 = vpack.c.b16 %v1484, %v1483
        %1501 = vmatprep.subr.bf16.mxu0 0
        %1502 = vmatpush1.bf16.msra.mxu0 %v1492
        %1503 = vmatprep.subr.bf16.mxu0 0
        %1504 = vmatpush1.bf16.msra.mxu0 %v1491
        %1505 = vmatprep.subr.bf16.mxu0 0
        %1506 = vmatpush1.bf16.msra.mxu0 %v1490
        %1507 = vmatprep.subr.bf16.mxu0 0
        %1508 = vmatpush1.bf16.msra.mxu0 %v1489
        %1509 = vmatprep.subr.bf16.mxu0 0
        %1510 = vmatpush1.bf16.msra.mxu0 %v1488
        %1511 = vmatprep.subr.bf16.mxu0 0
        %1512 = vmatpush1.bf16.msra.mxu0 %v1487
        %1513 = vmatprep.subr.bf16.mxu0 0
        %1514 = vmatpush1.bf16.msra.mxu0 %v1486
        %1515 = vmatprep.subr.bf16.mxu0 0
        %1516 = vmatpush1.bf16.msra.mxu0 %v1485
        %1517 = vmatprep.subr.bf16.mxu0 0
        %1518 = vmatpush2.bf16.msra.mxu0 0
        %1519 = vmatprep.subr.bf16.mxu0 0
        %1520 = vmatpush2.bf16.msra.mxu0 0
        %1521 = vmatprep.subr.bf16.mxu0 0
        %1522 = vmatpush2.bf16.msra.mxu0 0
        %1523 = vmatprep.subr.bf16.mxu0 0
        %1524 = vmatpush2.bf16.msra.mxu0 0
        %1525 = vmatprep.subr.bf16.mxu0 0
        %1526 = vmatpush2.bf16.msra.mxu0 0
        %1527 = vmatprep.subr.bf16.mxu0 0
        %1528 = vmatpush2.bf16.msra.mxu0 0
        %1529 = vmatprep.subr.bf16.mxu0 0
        %1530 = vmatpush2.bf16.msra.mxu0 0
        %1531 = vmatprep.subr.bf16.mxu0 0
        %1532 = vmatpush2.bf16.msra.mxu0 0
        %1533 = vmatprep.mubr.bf16.mxu0 0
        %1534 = vmatmul.mubr.bf16.gmra.mxu0 %v1429
        %v1535 = vpop.f32.mrf.mxu0
        %v1536 = vadd.f32 %v1451, %v1535
        %v1537 = vpop.f32.mrf.mxu0
        %v1538 = vpop.f32.mrf.mxu0
        %v1539 = vpop.f32.mrf.mxu0
        %1540 = vdwg.mxu0
        %v1541 = vmul.f32 %v1536, 0.5
        %v1542 = vtanh.pop %v1541
        %v1543 = vmul.f32 %v1542, 0.5
        %v1544 = vadd.f32 %v1543, 0.5
        %1545 = vst [vmem:[%s363] sm:$0xff] %v1544
        %1546 = vst [vmem:[%s367] sm:$0xff] %v900
        %s1547 = scalar_lea.vmem %s367, 8
        %1548 = vst [vmem:[%s1547] sm:$0xff] %v1420
        %1549 = vst [vmem:[%s371] sm:$0xff] %v898
        %s1550 = scalar_lea.vmem %s371, 8
        %1551 = vst [vmem:[%s1550] sm:$0xff] %v1418
      $region56: #{sentiment_lstm_forward.1} parent=47 // pred_fallthru
        _
      %p1552 = scmp.lt.s32.totalorder %s25, 0
      %s1553 = scalar_select %p1552, %s25, 0
      %s1554 = smul.addr %s1553, 8
      %s1555 = scalar_lea.vmem %s7, %s1554
      %p1556 = scmp.lt.s32.totalorder %s25, 0
      %s1557 = scalar_select %p1556, %s25, 0
      %s1558 = smul.addr %s1557, 8
      %s1559 = scalar_lea.vmem %s8, %s1558
      %p1560 = scmp.lt.s32.totalorder %s25, 0
      %s1561 = scalar_select %p1560, %s25, 0
      %s1562 = smul.addr %s1561, 8
      %s1563 = scalar_lea.vmem %s9, %s1562
      // Predicated region
      $region57: #{sentiment_lstm_forward.1} parent=47 // pred_check
        %p1564 = pneg %p205
      $region58: #{sentiment_lstm_forward.1} parent=47 // pred_check_branch
        %1566 = sbr.rel (%p1564) target = $region60
      $region59: #{sentiment_lstm_forward.1} parent=47 // pred_region
        _
      $region60: #{sentiment_lstm_forward.1} parent=47 // pred_fallthru
        _
      // Predicated region
      $region61: #{sentiment_lstm_forward.1} parent=47 // pred_check
        %p1567 = pneg %p231
      $region62: #{sentiment_lstm_forward.1} parent=47 // pred_check_branch
        %1569 = sbr.rel (%p1567) target = $region64
      $region63: #{sentiment_lstm_forward.1} parent=47 // pred_region
        _
      $region64: #{sentiment_lstm_forward.1} parent=47 // pred_fallthru
        _
      // Predicated region
      $region65: #{sentiment_lstm_forward.1} parent=47 // pred_check
        %p1570 = pneg %p257
      $region66: #{sentiment_lstm_forward.1} parent=47 // pred_check_branch
        %1572 = sbr.rel (%p1570) target = $region68
      $region67: #{sentiment_lstm_forward.1} parent=47 // pred_region
        _
      $region68: #{sentiment_lstm_forward.1} parent=47 // pred_fallthru
        _
      // Predicated region
      $region69: #{sentiment_lstm_forward.1} parent=47 // pred_check
        %p1573 = pneg %p205
      $region70: #{sentiment_lstm_forward.1} parent=47 // pred_check_branch
        %1575 = sbr.rel (%p1573) target = $region72
      $region71: #{sentiment_lstm_forward.1} parent=47 // pred_region
        %p1576 = scmp.lt.s32.totalorder %s25, 0
        %s1577 = scalar_select %p1576, %s25, 0
        %s1578 = smul.addr %s1577, 8
        %s1579 = scalar_lea.vmem %s7, %s1578
      $region72: #{sentiment_lstm_forward.1} parent=47 // pred_fallthru
        _
      // Predicated region
      $region73: #{sentiment_lstm_forward.1} parent=47 // pred_check
        %p1580 = pneg %p231
      $region74: #{sentiment_lstm_forward.1} parent=47 // pred_check_branch
        %1582 = sbr.rel (%p1580) target = $region76
      $region75: #{sentiment_lstm_forward.1} parent=47 // pred_region
        %p1583 = scmp.lt.s32.totalorder %s25, 0
        %s1584 = scalar_select %p1583, %s25, 0
        %s1585 = smul.addr %s1584, 8
        %s1586 = scalar_lea.vmem %s8, %s1585
      $region76: #{sentiment_lstm_forward.1} parent=47 // pred_fallthru
        _
      // Predicated region
      $region77: #{sentiment_lstm_forward.1} parent=47 // pred_check
        %p1587 = pneg %p257
      $region78: #{sentiment_lstm_forward.1} parent=47 // pred_check_branch
        %1589 = sbr.rel (%p1587) target = $region80
      $region79: #{sentiment_lstm_forward.1} parent=47 // pred_region
        %p1590 = scmp.lt.s32.totalorder %s25, 0
        %s1591 = scalar_select %p1590, %s25, 0
        %s1592 = smul.addr %s1591, 8
        %s1593 = scalar_lea.vmem %s9, %s1592
      $region80: #{sentiment_lstm_forward.1} parent=47 // pred_fallthru
        _
    $region48: #{sentiment_lstm_forward.1} parent=5 // pred_fallthru
      _
    %p1594 = scmp.le.s32.totalorder 2, %s16
    // Predicated region
    $region81: #{sentiment_lstm_forward.1} parent=5 // pred_check
      %p1595 = pneg %p1594
    $region82: #{sentiment_lstm_forward.1} parent=5 // pred_check_branch
      %1597 = sbr.rel (%p1595) target = $region84
    $region83: #{sentiment_lstm_forward.1} parent=5 // pred_region
      %s1598 = ssub.s32 %s16, 2
    $region84: #{sentiment_lstm_forward.1} parent=5 // pred_fallthru
      _
  $region6: #{sentiment_lstm_forward.1} parent=0 // loop_footer
    %s20 = sadd.s32 1, %s16
  $region7: #{sentiment_lstm_forward.1} parent=0 // loop_footer_branch
    %15 = sbr.rel target = $region3
  $region8: #{sentiment_lstm_forward.1} parent=0 // loop_exit
    _

</llo_original>
